<compile_context>
chip_gen: v5e
topology: v5e:2x2
jax: 0.10.0
libtpu: 0.0.40
codegen_flags: <defaults>
</compile_context>

<pallas_src>
import jax
import jax.numpy as jnp
from jax.experimental import pallas as pl
from jax.experimental.pallas import tpu as pltpu


def _sine_kernel(coef_ref, x_ref, o_ref):
    # coef_ref: SMEM (13,) float32 pre-folded scalars:
    #   [w0, c1..c6, b1..b6]  where c_k = 10*k*w_k and b_k = 10*a_k
    x = x_ref[...].astype(jnp.float32)
    acc = jnp.sin(coef_ref[0] * x)
    # Keep unrolled: 7 independent sin chains interleave across EUP/VALU slots.
    for k in range(1, 7):
        acc = acc + coef_ref[6 + k] * jnp.sin(coef_ref[k] * x)
    o_ref[...] = acc.astype(o_ref.dtype)


def sine_rowdy(x, params, *, tile_rows=8192):
    """Apply rowdy Sine activation elementwise via a Pallas TPU kernel.

    x:      any-shape float array (e.g. NCHW).
    params: (13,) array [w0, w1..w6, a1..a6] (raw module parameters).
    """
    orig_shape = x.shape
    out_dtype = x.dtype
    lane = 128

    # Pre-fold the scalar coefficients (12 fewer in-kernel scalar muls).
    params = params.astype(jnp.float32)
    ks = jnp.arange(1, 7, dtype=jnp.float32)
    coefs = jnp.concatenate(
        [params[:1], 10.0 * ks * params[1:7], 10.0 * params[7:13]]
    )

    # Dtype-aware sublane multiple for the tile's second-to-last dim:
    # f32 -> 8, bf16/f16 -> 16, int8/fp8 -> 32 sublanes per vreg.
    itemsize = jnp.dtype(out_dtype).itemsize
    sub = {4: 8, 2: 16, 1: 32}.get(itemsize, 8)

    # Flatten to a lane-dense (rows, 128) slab.  Pad only to the next lane
    # multiple (needed for the reshape); rows are NOT rounded up to a tile
    # multiple -- Pallas clips the partial final block and masks its stores.
    flat = x.reshape(-1)
    n = flat.shape[0]
    rows = pl.cdiv(n, lane)
    padded_n = rows * lane
    if padded_n != n:
        # NOTE: one extra HBM read+write for lane-unaligned element counts; a
        # fully pad-free ragged-tail epilogue would remove it on HBM-bound v5e.
        flat = jnp.pad(flat, (0, padded_n - n))
    x2d = flat.reshape(rows, lane)

    # Tile selection: big tiles (default 8192 rows = 4 MiB f32 per buffer) to
    # amortize per-step overhead; keep >= 4 grid steps when the array is big
    # enough so v7x's two TensorCores each get >= 2 steps (pipeline steady
    # state, DMA hidden behind compute).
    tr_cap = max(sub, (tile_rows // sub) * sub)
    tr = rows if rows <= tr_cap else tr_cap
    steps = pl.cdiv(rows, tr)
    if steps < 4 and rows >= 4 * 1024:
        tr = ((pl.cdiv(rows, 4) + sub - 1) // sub) * sub
        steps = pl.cdiv(rows, tr)

    out2d = pl.pallas_call(
        _sine_kernel,
        out_shape=jax.ShapeDtypeStruct((rows, lane), out_dtype),
        grid_spec=pltpu.PrefetchScalarGridSpec(
            num_scalar_prefetch=0,
            grid=(steps,),
            in_specs=[
                pl.BlockSpec(memory_space=pltpu.MemorySpace.SMEM),  # coefs (13,)
                pl.BlockSpec((tr, lane), lambda i: (i, 0)),         # x tile
            ],
            out_specs=pl.BlockSpec((tr, lane), lambda i: (i, 0)),
        ),
        compiler_params=pltpu.CompilerParams(
            dimension_semantics=("parallel",),
            # Cover in+out double-buffering at the 8192-row tile (<= 16 MiB)
            # on every generation, incl. v5e's 16 MiB scoped default.
            vmem_limit_bytes=32 * 1024 * 1024,
        ),
    )(coefs, x2d)

    out_flat = out2d.reshape(-1)
    if padded_n != n:
        out_flat = out_flat[:n]
    return out_flat.reshape(orig_shape)


def make_params(w0=1.0):
    # Deterministic init matching nn.Module __init__:
    # w0 = given, w1..w6 = 0.1, a1..a6 = 0.1
    return jnp.concatenate(
        [jnp.array([w0], jnp.float32), jnp.full((12,), 0.1, jnp.float32)]
    )


def sine_rowdy_ref(x, params):
    xf = x.astype(jnp.float32)
    p = params.astype(jnp.float32)
    out = jnp.sin(p[0] * xf)
    for k in range(1, 7):
        out = out + 10.0 * p[6 + k] * jnp.sin(10.0 * k * p[k] * xf)
    return out.astype(x.dtype)


if __name__ == "__main__":
    key = jax.random.PRNGKey(0)
    params = make_params(w0=1.0)

    # NCHW input like a small conv feature map (lane-aligned: 2048 elems).
    x = jax.random.normal(key, (2, 4, 16, 16), dtype=jnp.float32)
    y = jax.block_until_ready(sine_rowdy(x, params))
    y_ref = sine_rowdy_ref(x, params)
    assert y.shape == x.shape and y.dtype == x.dtype
    assert jnp.allclose(y, y_ref, atol=1e-4, rtol=1e-4)

    # Lane-unaligned shape: hits the minimal-pad / slice path.
    x2 = jax.random.normal(jax.random.PRNGKey(1), (3, 5, 7, 9), jnp.float32)
    y2 = jax.block_until_ready(sine_rowdy(x2, params))
    assert jnp.allclose(y2, sine_rowdy_ref(x2, params), atol=1e-4, rtol=1e-4)

    # Multi-step grid with a partial (masked) final block: rows=72, tr=16.
    x3 = jax.random.normal(jax.random.PRNGKey(2), (2, 4, 32, 36), jnp.float32)
    y3 = jax.block_until_ready(sine_rowdy(x3, params, tile_rows=16))
    assert jnp.allclose(y3, sine_rowdy_ref(x3, params), atol=1e-4, rtol=1e-4)

    # bf16 input: exercises the dtype-aware (16-sublane) rounding path;
    # compute stays f32 in-kernel, output cast to bf16.
    xb = jax.random.normal(jax.random.PRNGKey(3), (2, 4, 16, 16), jnp.bfloat16)
    yb = jax.block_until_ready(sine_rowdy(xb, params))
    assert yb.dtype == jnp.bfloat16 and yb.shape == xb.shape
    assert jnp.allclose(
        yb.astype(jnp.float32),
        sine_rowdy_ref(xb, params).astype(jnp.float32),
        atol=0.06, rtol=0.02,
    )

    print("KERNEL_OK")
</pallas_src>

<mosaic_0001>
module attributes {stable_mosaic.version = 11 : i64} {
  func.func @_sine_kernel(%arg0: i32, %arg1: memref<13xf32, #tpu.memory_space<smem>>, %arg2: memref<16x128xf32, #tpu.memory_space<vmem>>, %arg3: memref<16x128xf32, #tpu.memory_space<vmem>>) attributes {dimension_semantics = [#tpu.dimension_semantics<parallel>], iteration_bounds = array<i64: 1>, scalar_prefetch = 0 : i64, scratch_operands = 0 : i64, tpu.core_type = #tpu.core_type<tc>, window_params = [{transform_indices = @transform_0, window_bounds = array<i64: 13>}, {transform_indices = @transform_1, window_bounds = array<i64: 16, 128>}, {transform_indices = @transform_2, window_bounds = array<i64: 16, 128>}]} {
    %c0 = arith.constant 0 : index
    %c0_0 = arith.constant 0 : index
    %0 = vector.load %arg2[%c0, %c0_0] : memref<16x128xf32, #tpu.memory_space<vmem>>, vector<16x128xf32>
    %c0_1 = arith.constant 0 : index
    %1 = memref.load %arg1[%c0_1] : memref<13xf32, #tpu.memory_space<smem>>
    %2 = vector.broadcast %1 : f32 to vector<16x128xf32>
    %3 = arith.mulf %2, %0 : vector<16x128xf32>
    %4 = math.sin %3 : vector<16x128xf32>
    %c7 = arith.constant 7 : index
    %5 = memref.load %arg1[%c7] : memref<13xf32, #tpu.memory_space<smem>>
    %c1 = arith.constant 1 : index
    %6 = memref.load %arg1[%c1] : memref<13xf32, #tpu.memory_space<smem>>
    %7 = vector.broadcast %6 : f32 to vector<16x128xf32>
    %8 = arith.mulf %7, %0 : vector<16x128xf32>
    %9 = math.sin %8 : vector<16x128xf32>
    %10 = vector.broadcast %5 : f32 to vector<16x128xf32>
    %11 = arith.mulf %10, %9 : vector<16x128xf32>
    %12 = arith.addf %4, %11 : vector<16x128xf32>
    %c8 = arith.constant 8 : index
    %13 = memref.load %arg1[%c8] : memref<13xf32, #tpu.memory_space<smem>>
    %c2 = arith.constant 2 : index
    %14 = memref.load %arg1[%c2] : memref<13xf32, #tpu.memory_space<smem>>
    %15 = vector.broadcast %14 : f32 to vector<16x128xf32>
    %16 = arith.mulf %15, %0 : vector<16x128xf32>
    %17 = math.sin %16 : vector<16x128xf32>
    %18 = vector.broadcast %13 : f32 to vector<16x128xf32>
    %19 = arith.mulf %18, %17 : vector<16x128xf32>
    %20 = arith.addf %12, %19 : vector<16x128xf32>
    %c9 = arith.constant 9 : index
    %21 = memref.load %arg1[%c9] : memref<13xf32, #tpu.memory_space<smem>>
    %c3 = arith.constant 3 : index
    %22 = memref.load %arg1[%c3] : memref<13xf32, #tpu.memory_space<smem>>
    %23 = vector.broadcast %22 : f32 to vector<16x128xf32>
    %24 = arith.mulf %23, %0 : vector<16x128xf32>
    %25 = math.sin %24 : vector<16x128xf32>
    %26 = vector.broadcast %21 : f32 to vector<16x128xf32>
    %27 = arith.mulf %26, %25 : vector<16x128xf32>
    %28 = arith.addf %20, %27 : vector<16x128xf32>
    %c10 = arith.constant 10 : index
    %29 = memref.load %arg1[%c10] : memref<13xf32, #tpu.memory_space<smem>>
    %c4 = arith.constant 4 : index
    %30 = memref.load %arg1[%c4] : memref<13xf32, #tpu.memory_space<smem>>
    %31 = vector.broadcast %30 : f32 to vector<16x128xf32>
    %32 = arith.mulf %31, %0 : vector<16x128xf32>
    %33 = math.sin %32 : vector<16x128xf32>
    %34 = vector.broadcast %29 : f32 to vector<16x128xf32>
    %35 = arith.mulf %34, %33 : vector<16x128xf32>
    %36 = arith.addf %28, %35 : vector<16x128xf32>
    %c11 = arith.constant 11 : index
    %37 = memref.load %arg1[%c11] : memref<13xf32, #tpu.memory_space<smem>>
    %c5 = arith.constant 5 : index
    %38 = memref.load %arg1[%c5] : memref<13xf32, #tpu.memory_space<smem>>
    %39 = vector.broadcast %38 : f32 to vector<16x128xf32>
    %40 = arith.mulf %39, %0 : vector<16x128xf32>
    %41 = math.sin %40 : vector<16x128xf32>
    %42 = vector.broadcast %37 : f32 to vector<16x128xf32>
    %43 = arith.mulf %42, %41 : vector<16x128xf32>
    %44 = arith.addf %36, %43 : vector<16x128xf32>
    %c12 = arith.constant 12 : index
    %45 = memref.load %arg1[%c12] : memref<13xf32, #tpu.memory_space<smem>>
    %c6 = arith.constant 6 : index
    %46 = memref.load %arg1[%c6] : memref<13xf32, #tpu.memory_space<smem>>
    %47 = vector.broadcast %46 : f32 to vector<16x128xf32>
    %48 = arith.mulf %47, %0 : vector<16x128xf32>
    %49 = math.sin %48 : vector<16x128xf32>
    %50 = vector.broadcast %45 : f32 to vector<16x128xf32>
    %51 = arith.mulf %50, %49 : vector<16x128xf32>
    %52 = arith.addf %44, %51 : vector<16x128xf32>
    %c0_2 = arith.constant 0 : index
    %c0_3 = arith.constant 0 : index
    %53 = vector.load %arg3[%c0_2, %c0_3] : memref<16x128xf32, #tpu.memory_space<vmem>>, vector<16x128xf32>
    tpu.vector_store %arg3[%c0_2, %c0_3], %52 {strides = array<i32>} : memref<16x128xf32, #tpu.memory_space<vmem>>, vector<16x128xf32>,
    return
  }
  func.func @transform_0(%arg0: i32) -> i32 {
    %c0_i32 = arith.constant 0 : i32
    %c0_i32_0 = arith.constant 0 : i32
    return %c0_i32 : i32
  }
  func.func @transform_1(%arg0: i32) -> (i32, i32) {
    %c0_i32 = arith.constant 0 : i32
    %c0_i32_0 = arith.constant 0 : i32
    return %arg0, %c0_i32 : i32, i32
  }
  func.func @transform_2(%arg0: i32) -> (i32, i32) {
    %c0_i32 = arith.constant 0 : i32
    %c0_i32_0 = arith.constant 0 : i32
    return %arg0, %c0_i32 : i32, i32
  }
}

</mosaic_0001>

<llo_original>
// kernel: tpu_custom_call.1
$region0: #{tpu_custom_call.1}
  #allocation0 [shape = 'u32[]', space=smem, size = 0x4, offset = 0x4, fixed_abs, tag = 'smem constant byte address 0x4 - core index']
  #allocation1 [shape = 'u32[72,128]{1,0:T(1,128)}', space=vmem, size = 0x9000, scoped, tag = 'internal scratch']
  %s0 = inlined_call_operand.hbm [shape: f32[13], index: 0, kind: input, shape index: {}]
  %s1 = inlined_call_operand.hbm [shape: f32[16,128], index: 1, kind: input, shape index: {}]
  %s2 = inlined_call_operand.hbm [shape: f32[16,128], index: 2, kind: output, shape index: {}]
  %s3 = sld [smem:[#allocation0]]
  $region26: #{tpu_custom_call.1} parent=0
    _
  %s5 = ssub.s32 1, %s3
  %s6 = scalar_select 0, %s5, %s3
  $region1: #{tpu_custom_call.1} parent=0
    #allocation2 [shape = 'u8[512]{0}', space=smem, size = 0x200, scoped, tag = 'input window, operand 0, single buffered']
    #allocation3 [shape = 's32[1]{0}', space=sflag, size = 0x4, scoped, tag = 'scoped memory for tpu_custom_call.1']
    #allocation4 [shape = 's32[1]{0}', space=sflag, size = 0x4, scoped, tag = 'scoped memory for tpu_custom_call.1']
    #allocation5 [shape = 's32[1]{0}', space=sflag, size = 0x4, scoped, tag = 'scoped memory for tpu_custom_call.1']
    #allocation6 [shape = 'u8[8192]{0}', space=vmem, size = 0x2000, scoped, tag = 'input window, operand 1, single buffered']
    #allocation7 [shape = 'u8[8192]{0}', space=vmem, size = 0x2000, scoped, tag = 'output window, operand 0, single buffered']
    %7 = vsyncpa [#allocation5], 0
    %8 = vsyncpa [#allocation3], 0
    %9 = vsyncpa [#allocation4], 0
    // Predicated region
    $region2: #{tpu_custom_call.1} parent=1 // pred_check
      _
    $region3: #{tpu_custom_call.1} parent=1 // pred_check_branch
      %11 = sbr.rel (0) target = $region5
    $region4: #{tpu_custom_call.1} parent=1 // pred_region
      %13 = vsyncadd [#allocation5], 0
      %s15 = sshll.u32 %s0, 4
      %s16 = int_to_ptr.hbm [resolvable:$true] %s15
      %18 = dma.hbm_to_smem %s16, 16, [#allocation2], [#allocation5]
    $region5: #{tpu_custom_call.1} parent=1 // pred_fallthru
      _
    // Predicated region
    $region6: #{tpu_custom_call.1} parent=1 // pred_check
      _
    $region7: #{tpu_custom_call.1} parent=1 // pred_check_branch
      %20 = sbr.rel (0) target = $region9
    $region8: #{tpu_custom_call.1} parent=1 // pred_region
      %22 = vsyncadd [#allocation3], 0
      %s23 = sshll.u32 %s1, 4
      %s24 = int_to_ptr.hbm [resolvable:$true] %s23
      %s25 = sshll.u32 [#allocation6], 4
      %s26 = int_to_ptr.vmem [resolvable:$true] %s25
      %31 = dma.hbm_to_vmem [thread:$0]  %s24, 256, %s26, [#allocation3], 128, 128, 8
    $region9: #{tpu_custom_call.1} parent=1 // pred_fallthru
      _
    // Predicated region
    $region10: #{tpu_custom_call.1} parent=1 // pred_check
      _
    $region11: #{tpu_custom_call.1} parent=1 // pred_check_branch
      %33 = sbr.rel (0) target = $region13
    $region12: #{tpu_custom_call.1} parent=1 // pred_region
      %35 = dma.done [#allocation5], 16
    $region13: #{tpu_custom_call.1} parent=1 // pred_fallthru
      _
    // Predicated region
    $region14: #{tpu_custom_call.1} parent=1 // pred_check
      _
    $region15: #{tpu_custom_call.1} parent=1 // pred_check_branch
      %37 = sbr.rel (0) target = $region17
    $region16: #{tpu_custom_call.1} parent=1 // pred_region
      %39 = dma.done [#allocation3], 256
    $region17: #{tpu_custom_call.1} parent=1 // pred_fallthru
      _
    %40 = sfence
    %v41 = vld [vmem:[#allocation6] sm:$0xff]
    %v42 = vld [vmem:[#allocation6 + $0x8] sm:$0xff]
    %s43 = sld [smem:[#allocation2]]
    %v44 = vstv %s43
    %v45 = vmul.f32 %v44, %v41
    %v46 = vmul.f32 %v44, %v42
    %v47 = vand.u32 2147483647, %v45
    %vm48 = vcmp.le.f32.partialorder %v47, 0.7853982
    %vm49 = vcmp.lt.s32.totalorder %v45, 0
    %v50 = vand.u32 %v45, 2139095040
    %v51 = vshrl.u32 %v50, 23
    %v52 = vsub.s32 %v51, 127
    %v53 = vand.u32 2147483647, %v45
    %v54 = vand.u32 %v53, 8388607
    %v55 = vor.u32 %v54, 8388608
    %v56 = vsub.s32 0, %v55
    %v57 = vadd.s32 %v52, 1
    %vm58 = vcmp.gt.s32.totalorder %v57, 0
    %v59 = vsel %vm58, %v57, 0
    %v60 = vshrl.u32 %v59, 5
    %v61 = vand.u32 %v59, 31
    %v62 = vsub.s32 32, %v61
    %v63 = vshrl.u32 683565275, %v62
    %v64 = vshll.u32 683565275, %v61
    %v65 = vshrl.u32 2475754826, %v62
    %v66 = vor.u32 %v64, %v65
    %v67 = vshll.u32 2475754826, %v61
    %v68 = vshrl.u32 2131351028, %v62
    %v69 = vor.u32 %v67, %v68
    %v70 = vshll.u32 2131351028, %v61
    %v71 = vshrl.u32 2102212464, %v62
    %v72 = vor.u32 %v70, %v71
    %v73 = vshll.u32 2102212464, %v61
    %v74 = vshrl.u32 920167782, %v62
    %v75 = vor.u32 %v73, %v74
    %v76 = vshll.u32 920167782, %v61
    %v77 = vshrl.u32 1326507024, %v62
    %v78 = vor.u32 %v76, %v77
    %vm79 = vcmp.lt.s32.totalorder %v60, 1
    %vm80 = vcmp.lt.s32.totalorder %v60, 2
    %vm81 = vcmp.lt.s32.totalorder %v60, 3
    %vm82 = vcmp.lt.s32.totalorder %v60, 4
    %v83 = vsel %vm79, %v63, %v66
    %v84 = vsel %vm82, %v72, 2102212464
    %v85 = vsel %vm81, %v69, %v84
    %v86 = vsel %vm80, %v83, %v85
    %v87 = vsel %vm79, %v66, %v69
    %v88 = vsel %vm82, %v75, 920167782
    %v89 = vsel %vm81, %v72, %v88
    %v90 = vsel %vm80, %v87, %v89
    %v91 = vsel %vm79, %v69, %v72
    %v92 = vsel %vm82, %v78, 1326507024
    %v93 = vsel %vm81, %v75, %v92
    %v94 = vsel %vm80, %v91, %v93
    %v95 = vshll.u32 %v55, 8
    %v96 = vand.u32 %v95, 65535
    %v97 = vshrl.u32 %v95, 16
    %v98 = vand.u32 %v94, 65535
    %v99 = vshrl.u32 %v94, 16
    %v100 = vmul.u32 %v96, %v98
    %v101 = vmul.u32 %v96, %v99
    %v102 = vmul.u32 %v97, %v98
    %v103 = vmul.u32 %v97, %v99
    %v104 = vshll.u32 %v101, 16
    %v105 = vshrl.u32 %v101, 16
    %v106 = vshll.u32 %v102, 16
    %v107 = vshrl.u32 %v102, 16
    %vm108 = vc.u32 %v100, %v104
    %v109 = vsel %vm108, 1, 0
    %v110 = vadd.s32 %v100, %v104
    %v111 = vadd.s32 %v103, %v109
    %vm112 = vc.u32 %v110, %v106
    %v113 = vsel %vm112, 1, 0
    %v114 = vadd.s32 %v110, %v106
    %v115 = vadd.s32 %v111, %v113
    %v116 = vadd.s32 %v115, %v105
    %v117 = vadd.s32 %v116, %v107
    %v118 = vand.u32 %v95, 65535
    %v119 = vshrl.u32 %v95, 16
    %v120 = vand.u32 %v90, 65535
    %v121 = vshrl.u32 %v90, 16
    %v122 = vmul.u32 %v118, %v120
    %v123 = vmul.u32 %v118, %v121
    %v124 = vmul.u32 %v119, %v120
    %v125 = vmul.u32 %v119, %v121
    %v126 = vshll.u32 %v123, 16
    %v127 = vshrl.u32 %v123, 16
    %v128 = vshll.u32 %v124, 16
    %v129 = vshrl.u32 %v124, 16
    %vm130 = vc.u32 %v122, %v126
    %v131 = vsel %vm130, 1, 0
    %v132 = vadd.s32 %v122, %v126
    %v133 = vadd.s32 %v125, %v131
    %vm134 = vc.u32 %v132, %v128
    %v135 = vsel %vm134, 1, 0
    %v136 = vadd.s32 %v132, %v128
    %v137 = vadd.s32 %v133, %v135
    %v138 = vadd.s32 %v137, %v127
    %v139 = vadd.s32 %v138, %v129
    %v140 = vmul.u32 %v95, %v86
    %v141 = vadd.s32 %v117, %v136
    %vm142 = vc.u32 %v117, %v136
    %v143 = vadd.s32 %v139, 1
    %v144 = vsel %vm142, %v143, %v139
    %v145 = vadd.s32 %v140, %v144
    %v146 = vadd.s32 %v145, 536870912
    %v147 = vshrl.u32 %v146, 30
    %v148 = vshll.u32 %v147, 30
    %v149 = vsub.s32 %v145, %v148
    %vm150 = vcmp.lt.s32.totalorder %v149, 0
    %v151 = vsub.s32 0, %v149
    %v152 = vsel %vm150, %v151, %v149
    %v153 = vclz %v152
    %v154 = vsub.s32 %v153, 2
    %vm155 = vcmp.gt.s32.totalorder 0, %v154
    %v156 = vsel %vm155, 0, %v154
    %v157 = vsub.s32 32, %v156
    %v158 = vshll.u32 %v149, %v156
    %v159 = vshrl.u32 %v141, %v157
    %v160 = vor.u32 %v158, %v159
    %v161 = vsub.s32 4294967266, %v156
    %v162 = vadd.s32 %v161, 127
    %v163 = vshll.u32 %v162, 23
    %v164 = vor.u32 4788187, %v163
    %v165 = vand.u32 2147483647, %v164
    %v167 = vcvt.s32.f32 %v160
    %v168 = vmul.f32 %v167, %v165
    %v169 = vxor.u32 %v168, 2147483648
    %v170 = vsel %vm49, %v169, %v168
    %v171 = vsub.s32 4, %v147
    %v172 = vsel %vm49, %v171, %v147
    %v173 = vsel %vm48, %v45, %v170
    %v174 = vsel %vm48, 0, %v172
    %v175 = vmul.f32 %v173, %v173
    %v176 = vmul.f32 %v175, -0.001358992
    %v177 = vadd.f32 %v176, 0.041655596
    %v178 = vmul.f32 %v175, %v177
    %v179 = vadd.f32 %v178, -0.4999988
    %v180 = vmul.f32 %v175, %v179
    %v181 = vadd.f32 1.0, %v180
    %v182 = vmul.f32 %v173, %v173
    %v183 = vmul.f32 %v182, -0.00019511016
    %v184 = vadd.f32 %v183, 0.008332121
    %v185 = vmul.f32 %v182, %v184
    %v186 = vadd.f32 %v185, -0.16666654
    %v187 = vmul.f32 %v182, %v186
    %v188 = vadd.f32 %v187, 1.0
    %v189 = vmul.f32 %v188, %v173
    %vm190 = vweird.f32 %v45
    %v191 = vadd.s32 %v174, 3
    %v192 = vand.u32 %v191, 3
    %vm193 = vcmp.lt.s32.totalorder %v192, 2
    %vm194 = vcmp.eq.s32.totalorder %v192, 0
    %v195 = vxor.u32 %v189, 2147483648
    %v196 = vsel %vm194, %v181, %v195
    %vm197 = vcmp.eq.s32.totalorder %v192, 2
    %v198 = vxor.u32 %v181, 2147483648
    %v199 = vsel %vm197, %v198, %v189
    %v200 = vsel %vm193, %v196, %v199
    %v201 = vsel %vm190, nan, %v200
    %v202 = vand.u32 2147483647, %v46
    %vm203 = vcmp.le.f32.partialorder %v202, 0.7853982
    %vm204 = vcmp.lt.s32.totalorder %v46, 0
    %v205 = vand.u32 %v46, 2139095040
    %v206 = vshrl.u32 %v205, 23
    %v207 = vsub.s32 %v206, 127
    %v208 = vand.u32 2147483647, %v46
    %v209 = vand.u32 %v208, 8388607
    %v210 = vor.u32 %v209, 8388608
    %v211 = vsub.s32 0, %v210
    %v212 = vadd.s32 %v207, 1
    %vm213 = vcmp.gt.s32.totalorder %v212, 0
    %v214 = vsel %vm213, %v212, 0
    %v215 = vshrl.u32 %v214, 5
    %v216 = vand.u32 %v214, 31
    %v217 = vsub.s32 32, %v216
    %v218 = vshrl.u32 683565275, %v217
    %v219 = vshll.u32 683565275, %v216
    %v220 = vshrl.u32 2475754826, %v217
    %v221 = vor.u32 %v219, %v220
    %v222 = vshll.u32 2475754826, %v216
    %v223 = vshrl.u32 2131351028, %v217
    %v224 = vor.u32 %v222, %v223
    %v225 = vshll.u32 2131351028, %v216
    %v226 = vshrl.u32 2102212464, %v217
    %v227 = vor.u32 %v225, %v226
    %v228 = vshll.u32 2102212464, %v216
    %v229 = vshrl.u32 920167782, %v217
    %v230 = vor.u32 %v228, %v229
    %v231 = vshll.u32 920167782, %v216
    %v232 = vshrl.u32 1326507024, %v217
    %v233 = vor.u32 %v231, %v232
    %vm234 = vcmp.lt.s32.totalorder %v215, 1
    %vm235 = vcmp.lt.s32.totalorder %v215, 2
    %vm236 = vcmp.lt.s32.totalorder %v215, 3
    %vm237 = vcmp.lt.s32.totalorder %v215, 4
    %v238 = vsel %vm234, %v218, %v221
    %v239 = vsel %vm237, %v227, 2102212464
    %v240 = vsel %vm236, %v224, %v239
    %v241 = vsel %vm235, %v238, %v240
    %v242 = vsel %vm234, %v221, %v224
    %v243 = vsel %vm237, %v230, 920167782
    %v244 = vsel %vm236, %v227, %v243
    %v245 = vsel %vm235, %v242, %v244
    %v246 = vsel %vm234, %v224, %v227
    %v247 = vsel %vm237, %v233, 1326507024
    %v248 = vsel %vm236, %v230, %v247
    %v249 = vsel %vm235, %v246, %v248
    %v250 = vshll.u32 %v210, 8
    %v251 = vand.u32 %v250, 65535
    %v252 = vshrl.u32 %v250, 16
    %v253 = vand.u32 %v249, 65535
    %v254 = vshrl.u32 %v249, 16
    %v255 = vmul.u32 %v251, %v253
    %v256 = vmul.u32 %v251, %v254
    %v257 = vmul.u32 %v252, %v253
    %v258 = vmul.u32 %v252, %v254
    %v259 = vshll.u32 %v256, 16
    %v260 = vshrl.u32 %v256, 16
    %v261 = vshll.u32 %v257, 16
    %v262 = vshrl.u32 %v257, 16
    %vm263 = vc.u32 %v255, %v259
    %v264 = vsel %vm263, 1, 0
    %v265 = vadd.s32 %v255, %v259
    %v266 = vadd.s32 %v258, %v264
    %vm267 = vc.u32 %v265, %v261
    %v268 = vsel %vm267, 1, 0
    %v269 = vadd.s32 %v265, %v261
    %v270 = vadd.s32 %v266, %v268
    %v271 = vadd.s32 %v270, %v260
    %v272 = vadd.s32 %v271, %v262
    %v273 = vand.u32 %v250, 65535
    %v274 = vshrl.u32 %v250, 16
    %v275 = vand.u32 %v245, 65535
    %v276 = vshrl.u32 %v245, 16
    %v277 = vmul.u32 %v273, %v275
    %v278 = vmul.u32 %v273, %v276
    %v279 = vmul.u32 %v274, %v275
    %v280 = vmul.u32 %v274, %v276
    %v281 = vshll.u32 %v278, 16
    %v282 = vshrl.u32 %v278, 16
    %v283 = vshll.u32 %v279, 16
    %v284 = vshrl.u32 %v279, 16
    %vm285 = vc.u32 %v277, %v281
    %v286 = vsel %vm285, 1, 0
    %v287 = vadd.s32 %v277, %v281
    %v288 = vadd.s32 %v280, %v286
    %vm289 = vc.u32 %v287, %v283
    %v290 = vsel %vm289, 1, 0
    %v291 = vadd.s32 %v287, %v283
    %v292 = vadd.s32 %v288, %v290
    %v293 = vadd.s32 %v292, %v282
    %v294 = vadd.s32 %v293, %v284
    %v295 = vmul.u32 %v250, %v241
    %v296 = vadd.s32 %v272, %v291
    %vm297 = vc.u32 %v272, %v291
    %v298 = vadd.s32 %v294, 1
    %v299 = vsel %vm297, %v298, %v294
    %v300 = vadd.s32 %v295, %v299
    %v301 = vadd.s32 %v300, 536870912
    %v302 = vshrl.u32 %v301, 30
    %v303 = vshll.u32 %v302, 30
    %v304 = vsub.s32 %v300, %v303
    %vm305 = vcmp.lt.s32.totalorder %v304, 0
    %v306 = vsub.s32 0, %v304
    %v307 = vsel %vm305, %v306, %v304
    %v308 = vclz %v307
    %v309 = vsub.s32 %v308, 2
    %vm310 = vcmp.gt.s32.totalorder 0, %v309
    %v311 = vsel %vm310, 0, %v309
    %v312 = vsub.s32 32, %v311
    %v313 = vshll.u32 %v304, %v311
    %v314 = vshrl.u32 %v296, %v312
    %v315 = vor.u32 %v313, %v314
    %v316 = vsub.s32 4294967266, %v311
    %v317 = vadd.s32 %v316, 127
    %v318 = vshll.u32 %v317, 23
    %v319 = vor.u32 4788187, %v318
    %v320 = vand.u32 2147483647, %v319
    %v322 = vcvt.s32.f32 %v315
    %v323 = vmul.f32 %v322, %v320
    %v324 = vxor.u32 %v323, 2147483648
    %v325 = vsel %vm204, %v324, %v323
    %v326 = vsub.s32 4, %v302
    %v327 = vsel %vm204, %v326, %v302
    %v328 = vsel %vm203, %v46, %v325
    %v329 = vsel %vm203, 0, %v327
    %v330 = vmul.f32 %v328, %v328
    %v331 = vmul.f32 %v330, -0.001358992
    %v332 = vadd.f32 %v331, 0.041655596
    %v333 = vmul.f32 %v330, %v332
    %v334 = vadd.f32 %v333, -0.4999988
    %v335 = vmul.f32 %v330, %v334
    %v336 = vadd.f32 1.0, %v335
    %v337 = vmul.f32 %v328, %v328
    %v338 = vmul.f32 %v337, -0.00019511016
    %v339 = vadd.f32 %v338, 0.008332121
    %v340 = vmul.f32 %v337, %v339
    %v341 = vadd.f32 %v340, -0.16666654
    %v342 = vmul.f32 %v337, %v341
    %v343 = vadd.f32 %v342, 1.0
    %v344 = vmul.f32 %v343, %v328
    %vm345 = vweird.f32 %v46
    %v346 = vadd.s32 %v329, 3
    %v347 = vand.u32 %v346, 3
    %vm348 = vcmp.lt.s32.totalorder %v347, 2
    %vm349 = vcmp.eq.s32.totalorder %v347, 0
    %v350 = vxor.u32 %v344, 2147483648
    %v351 = vsel %vm349, %v336, %v350
    %vm352 = vcmp.eq.s32.totalorder %v347, 2
    %v353 = vxor.u32 %v336, 2147483648
    %v354 = vsel %vm352, %v353, %v344
    %v355 = vsel %vm348, %v351, %v354
    %v356 = vsel %vm345, nan, %v355
    %s357 = sld [smem:[#allocation2 + $0x7]]
    %s358 = sld [smem:[#allocation2 + $0x1]]
    %v359 = vstv %s358
    %v360 = vmul.f32 %v359, %v41
    %v361 = vmul.f32 %v359, %v42
    %v362 = vand.u32 2147483647, %v360
    %vm363 = vcmp.le.f32.partialorder %v362, 0.7853982
    %vm364 = vcmp.lt.s32.totalorder %v360, 0
    %v365 = vand.u32 %v360, 2139095040
    %v366 = vshrl.u32 %v365, 23
    %v367 = vsub.s32 %v366, 127
    %v368 = vand.u32 2147483647, %v360
    %v369 = vand.u32 %v368, 8388607
    %v370 = vor.u32 %v369, 8388608
    %v371 = vsub.s32 0, %v370
    %v372 = vadd.s32 %v367, 1
    %vm373 = vcmp.gt.s32.totalorder %v372, 0
    %v374 = vsel %vm373, %v372, 0
    %v375 = vshrl.u32 %v374, 5
    %v376 = vand.u32 %v374, 31
    %v377 = vsub.s32 32, %v376
    %v378 = vshrl.u32 683565275, %v377
    %v379 = vshll.u32 683565275, %v376
    %v380 = vshrl.u32 2475754826, %v377
    %v381 = vor.u32 %v379, %v380
    %v382 = vshll.u32 2475754826, %v376
    %v383 = vshrl.u32 2131351028, %v377
    %v384 = vor.u32 %v382, %v383
    %v385 = vshll.u32 2131351028, %v376
    %v386 = vshrl.u32 2102212464, %v377
    %v387 = vor.u32 %v385, %v386
    %v388 = vshll.u32 2102212464, %v376
    %v389 = vshrl.u32 920167782, %v377
    %v390 = vor.u32 %v388, %v389
    %v391 = vshll.u32 920167782, %v376
    %v392 = vshrl.u32 1326507024, %v377
    %v393 = vor.u32 %v391, %v392
    %vm394 = vcmp.lt.s32.totalorder %v375, 1
    %vm395 = vcmp.lt.s32.totalorder %v375, 2
    %vm396 = vcmp.lt.s32.totalorder %v375, 3
    %vm397 = vcmp.lt.s32.totalorder %v375, 4
    %v398 = vsel %vm394, %v378, %v381
    %v399 = vsel %vm397, %v387, 2102212464
    %v400 = vsel %vm396, %v384, %v399
    %v401 = vsel %vm395, %v398, %v400
    %v402 = vsel %vm394, %v381, %v384
    %v403 = vsel %vm397, %v390, 920167782
    %v404 = vsel %vm396, %v387, %v403
    %v405 = vsel %vm395, %v402, %v404
    %v406 = vsel %vm394, %v384, %v387
    %v407 = vsel %vm397, %v393, 1326507024
    %v408 = vsel %vm396, %v390, %v407
    %v409 = vsel %vm395, %v406, %v408
    %v410 = vshll.u32 %v370, 8
    %v411 = vand.u32 %v410, 65535
    %v412 = vshrl.u32 %v410, 16
    %v413 = vand.u32 %v409, 65535
    %v414 = vshrl.u32 %v409, 16
    %v415 = vmul.u32 %v411, %v413
    %v416 = vmul.u32 %v411, %v414
    %v417 = vmul.u32 %v412, %v413
    %v418 = vmul.u32 %v412, %v414
    %v419 = vshll.u32 %v416, 16
    %v420 = vshrl.u32 %v416, 16
    %v421 = vshll.u32 %v417, 16
    %v422 = vshrl.u32 %v417, 16
    %vm423 = vc.u32 %v415, %v419
    %v424 = vsel %vm423, 1, 0
    %v425 = vadd.s32 %v415, %v419
    %v426 = vadd.s32 %v418, %v424
    %vm427 = vc.u32 %v425, %v421
    %v428 = vsel %vm427, 1, 0
    %v429 = vadd.s32 %v425, %v421
    %v430 = vadd.s32 %v426, %v428
    %v431 = vadd.s32 %v430, %v420
    %v432 = vadd.s32 %v431, %v422
    %v433 = vand.u32 %v410, 65535
    %v434 = vshrl.u32 %v410, 16
    %v435 = vand.u32 %v405, 65535
    %v436 = vshrl.u32 %v405, 16
    %v437 = vmul.u32 %v433, %v435
    %v438 = vmul.u32 %v433, %v436
    %v439 = vmul.u32 %v434, %v435
    %v440 = vmul.u32 %v434, %v436
    %v441 = vshll.u32 %v438, 16
    %v442 = vshrl.u32 %v438, 16
    %v443 = vshll.u32 %v439, 16
    %v444 = vshrl.u32 %v439, 16
    %vm445 = vc.u32 %v437, %v441
    %v446 = vsel %vm445, 1, 0
    %v447 = vadd.s32 %v437, %v441
    %v448 = vadd.s32 %v440, %v446
    %vm449 = vc.u32 %v447, %v443
    %v450 = vsel %vm449, 1, 0
    %v451 = vadd.s32 %v447, %v443
    %v452 = vadd.s32 %v448, %v450
    %v453 = vadd.s32 %v452, %v442
    %v454 = vadd.s32 %v453, %v444
    %v455 = vmul.u32 %v410, %v401
    %v456 = vadd.s32 %v432, %v451
    %vm457 = vc.u32 %v432, %v451
    %v458 = vadd.s32 %v454, 1
    %v459 = vsel %vm457, %v458, %v454
    %v460 = vadd.s32 %v455, %v459
    %v461 = vadd.s32 %v460, 536870912
    %v462 = vshrl.u32 %v461, 30
    %v463 = vshll.u32 %v462, 30
    %v464 = vsub.s32 %v460, %v463
    %vm465 = vcmp.lt.s32.totalorder %v464, 0
    %v466 = vsub.s32 0, %v464
    %v467 = vsel %vm465, %v466, %v464
    %v468 = vclz %v467
    %v469 = vsub.s32 %v468, 2
    %vm470 = vcmp.gt.s32.totalorder 0, %v469
    %v471 = vsel %vm470, 0, %v469
    %v472 = vsub.s32 32, %v471
    %v473 = vshll.u32 %v464, %v471
    %v474 = vshrl.u32 %v456, %v472
    %v475 = vor.u32 %v473, %v474
    %v476 = vsub.s32 4294967266, %v471
    %v477 = vadd.s32 %v476, 127
    %v478 = vshll.u32 %v477, 23
    %v479 = vor.u32 4788187, %v478
    %v480 = vand.u32 2147483647, %v479
    %v482 = vcvt.s32.f32 %v475
    %v483 = vmul.f32 %v482, %v480
    %v484 = vxor.u32 %v483, 2147483648
    %v485 = vsel %vm364, %v484, %v483
    %v486 = vsub.s32 4, %v462
    %v487 = vsel %vm364, %v486, %v462
    %v488 = vsel %vm363, %v360, %v485
    %v489 = vsel %vm363, 0, %v487
    %v490 = vmul.f32 %v488, %v488
    %v491 = vmul.f32 %v490, -0.001358992
    %v492 = vadd.f32 %v491, 0.041655596
    %v493 = vmul.f32 %v490, %v492
    %v494 = vadd.f32 %v493, -0.4999988
    %v495 = vmul.f32 %v490, %v494
    %v496 = vadd.f32 1.0, %v495
    %v497 = vmul.f32 %v488, %v488
    %v498 = vmul.f32 %v497, -0.00019511016
    %v499 = vadd.f32 %v498, 0.008332121
    %v500 = vmul.f32 %v497, %v499
    %v501 = vadd.f32 %v500, -0.16666654
    %v502 = vmul.f32 %v497, %v501
    %v503 = vadd.f32 %v502, 1.0
    %v504 = vmul.f32 %v503, %v488
    %vm505 = vweird.f32 %v360
    %v506 = vadd.s32 %v489, 3
    %v507 = vand.u32 %v506, 3
    %vm508 = vcmp.lt.s32.totalorder %v507, 2
    %vm509 = vcmp.eq.s32.totalorder %v507, 0
    %v510 = vxor.u32 %v504, 2147483648
    %v511 = vsel %vm509, %v496, %v510
    %vm512 = vcmp.eq.s32.totalorder %v507, 2
    %v513 = vxor.u32 %v496, 2147483648
    %v514 = vsel %vm512, %v513, %v504
    %v515 = vsel %vm508, %v511, %v514
    %v516 = vsel %vm505, nan, %v515
    %v517 = vand.u32 2147483647, %v361
    %vm518 = vcmp.le.f32.partialorder %v517, 0.7853982
    %vm519 = vcmp.lt.s32.totalorder %v361, 0
    %v520 = vand.u32 %v361, 2139095040
    %v521 = vshrl.u32 %v520, 23
    %v522 = vsub.s32 %v521, 127
    %v523 = vand.u32 2147483647, %v361
    %v524 = vand.u32 %v523, 8388607
    %v525 = vor.u32 %v524, 8388608
    %v526 = vsub.s32 0, %v525
    %v527 = vadd.s32 %v522, 1
    %vm528 = vcmp.gt.s32.totalorder %v527, 0
    %v529 = vsel %vm528, %v527, 0
    %v530 = vshrl.u32 %v529, 5
    %v531 = vand.u32 %v529, 31
    %v532 = vsub.s32 32, %v531
    %v533 = vshrl.u32 683565275, %v532
    %v534 = vshll.u32 683565275, %v531
    %v535 = vshrl.u32 2475754826, %v532
    %v536 = vor.u32 %v534, %v535
    %v537 = vshll.u32 2475754826, %v531
    %v538 = vshrl.u32 2131351028, %v532
    %v539 = vor.u32 %v537, %v538
    %v540 = vshll.u32 2131351028, %v531
    %v541 = vshrl.u32 2102212464, %v532
    %v542 = vor.u32 %v540, %v541
    %v543 = vshll.u32 2102212464, %v531
    %v544 = vshrl.u32 920167782, %v532
    %v545 = vor.u32 %v543, %v544
    %v546 = vshll.u32 920167782, %v531
    %v547 = vshrl.u32 1326507024, %v532
    %v548 = vor.u32 %v546, %v547
    %vm549 = vcmp.lt.s32.totalorder %v530, 1
    %vm550 = vcmp.lt.s32.totalorder %v530, 2
    %vm551 = vcmp.lt.s32.totalorder %v530, 3
    %vm552 = vcmp.lt.s32.totalorder %v530, 4
    %v553 = vsel %vm549, %v533, %v536
    %v554 = vsel %vm552, %v542, 2102212464
    %v555 = vsel %vm551, %v539, %v554
    %v556 = vsel %vm550, %v553, %v555
    %v557 = vsel %vm549, %v536, %v539
    %v558 = vsel %vm552, %v545, 920167782
    %v559 = vsel %vm551, %v542, %v558
    %v560 = vsel %vm550, %v557, %v559
    %v561 = vsel %vm549, %v539, %v542
    %v562 = vsel %vm552, %v548, 1326507024
    %v563 = vsel %vm551, %v545, %v562
    %v564 = vsel %vm550, %v561, %v563
    %v565 = vshll.u32 %v525, 8
    %v566 = vand.u32 %v565, 65535
    %v567 = vshrl.u32 %v565, 16
    %v568 = vand.u32 %v564, 65535
    %v569 = vshrl.u32 %v564, 16
    %v570 = vmul.u32 %v566, %v568
    %v571 = vmul.u32 %v566, %v569
    %v572 = vmul.u32 %v567, %v568
    %v573 = vmul.u32 %v567, %v569
    %v574 = vshll.u32 %v571, 16
    %v575 = vshrl.u32 %v571, 16
    %v576 = vshll.u32 %v572, 16
    %v577 = vshrl.u32 %v572, 16
    %vm578 = vc.u32 %v570, %v574
    %v579 = vsel %vm578, 1, 0
    %v580 = vadd.s32 %v570, %v574
    %v581 = vadd.s32 %v573, %v579
    %vm582 = vc.u32 %v580, %v576
    %v583 = vsel %vm582, 1, 0
    %v584 = vadd.s32 %v580, %v576
    %v585 = vadd.s32 %v581, %v583
    %v586 = vadd.s32 %v585, %v575
    %v587 = vadd.s32 %v586, %v577
    %v588 = vand.u32 %v565, 65535
    %v589 = vshrl.u32 %v565, 16
    %v590 = vand.u32 %v560, 65535
    %v591 = vshrl.u32 %v560, 16
    %v592 = vmul.u32 %v588, %v590
    %v593 = vmul.u32 %v588, %v591
    %v594 = vmul.u32 %v589, %v590
    %v595 = vmul.u32 %v589, %v591
    %v596 = vshll.u32 %v593, 16
    %v597 = vshrl.u32 %v593, 16
    %v598 = vshll.u32 %v594, 16
    %v599 = vshrl.u32 %v594, 16
    %vm600 = vc.u32 %v592, %v596
    %v601 = vsel %vm600, 1, 0
    %v602 = vadd.s32 %v592, %v596
    %v603 = vadd.s32 %v595, %v601
    %vm604 = vc.u32 %v602, %v598
    %v605 = vsel %vm604, 1, 0
    %v606 = vadd.s32 %v602, %v598
    %v607 = vadd.s32 %v603, %v605
    %v608 = vadd.s32 %v607, %v597
    %v609 = vadd.s32 %v608, %v599
    %v610 = vmul.u32 %v565, %v556
    %v611 = vadd.s32 %v587, %v606
    %vm612 = vc.u32 %v587, %v606
    %v613 = vadd.s32 %v609, 1
    %v614 = vsel %vm612, %v613, %v609
    %v615 = vadd.s32 %v610, %v614
    %v616 = vadd.s32 %v615, 536870912
    %v617 = vshrl.u32 %v616, 30
    %v618 = vshll.u32 %v617, 30
    %v619 = vsub.s32 %v615, %v618
    %vm620 = vcmp.lt.s32.totalorder %v619, 0
    %v621 = vsub.s32 0, %v619
    %v622 = vsel %vm620, %v621, %v619
    %v623 = vclz %v622
    %v624 = vsub.s32 %v623, 2
    %vm625 = vcmp.gt.s32.totalorder 0, %v624
    %v626 = vsel %vm625, 0, %v624
    %v627 = vsub.s32 32, %v626
    %v628 = vshll.u32 %v619, %v626
    %v629 = vshrl.u32 %v611, %v627
    %v630 = vor.u32 %v628, %v629
    %v631 = vsub.s32 4294967266, %v626
    %v632 = vadd.s32 %v631, 127
    %v633 = vshll.u32 %v632, 23
    %v634 = vor.u32 4788187, %v633
    %v635 = vand.u32 2147483647, %v634
    %v637 = vcvt.s32.f32 %v630
    %v638 = vmul.f32 %v637, %v635
    %v639 = vxor.u32 %v638, 2147483648
    %v640 = vsel %vm519, %v639, %v638
    %v641 = vsub.s32 4, %v617
    %v642 = vsel %vm519, %v641, %v617
    %v643 = vsel %vm518, %v361, %v640
    %v644 = vsel %vm518, 0, %v642
    %v645 = vmul.f32 %v643, %v643
    %v646 = vmul.f32 %v645, -0.001358992
    %v647 = vadd.f32 %v646, 0.041655596
    %v648 = vmul.f32 %v645, %v647
    %v649 = vadd.f32 %v648, -0.4999988
    %v650 = vmul.f32 %v645, %v649
    %v651 = vadd.f32 1.0, %v650
    %v652 = vmul.f32 %v643, %v643
    %v653 = vmul.f32 %v652, -0.00019511016
    %v654 = vadd.f32 %v653, 0.008332121
    %v655 = vmul.f32 %v652, %v654
    %v656 = vadd.f32 %v655, -0.16666654
    %v657 = vmul.f32 %v652, %v656
    %v658 = vadd.f32 %v657, 1.0
    %v659 = vmul.f32 %v658, %v643
    %vm660 = vweird.f32 %v361
    %v661 = vadd.s32 %v644, 3
    %v662 = vand.u32 %v661, 3
    %vm663 = vcmp.lt.s32.totalorder %v662, 2
    %vm664 = vcmp.eq.s32.totalorder %v662, 0
    %v665 = vxor.u32 %v659, 2147483648
    %v666 = vsel %vm664, %v651, %v665
    %vm667 = vcmp.eq.s32.totalorder %v662, 2
    %v668 = vxor.u32 %v651, 2147483648
    %v669 = vsel %vm667, %v668, %v659
    %v670 = vsel %vm663, %v666, %v669
    %v671 = vsel %vm660, nan, %v670
    %v672 = vstv %s357
    %v673 = vmul.f32 %v672, %v516
    %v674 = vmul.f32 %v672, %v671
    %v675 = vadd.f32 %v201, %v673
    %v676 = vadd.f32 %v356, %v674
    %s677 = sld [smem:[#allocation2 + $0x8]]
    %s678 = sld [smem:[#allocation2 + $0x2]]
    %v679 = vstv %s678
    %v680 = vmul.f32 %v679, %v41
    %v681 = vmul.f32 %v679, %v42
    %v682 = vand.u32 2147483647, %v680
    %vm683 = vcmp.le.f32.partialorder %v682, 0.7853982
    %vm684 = vcmp.lt.s32.totalorder %v680, 0
    %v685 = vand.u32 %v680, 2139095040
    %v686 = vshrl.u32 %v685, 23
    %v687 = vsub.s32 %v686, 127
    %v688 = vand.u32 2147483647, %v680
    %v689 = vand.u32 %v688, 8388607
    %v690 = vor.u32 %v689, 8388608
    %v691 = vsub.s32 0, %v690
    %v692 = vadd.s32 %v687, 1
    %vm693 = vcmp.gt.s32.totalorder %v692, 0
    %v694 = vsel %vm693, %v692, 0
    %v695 = vshrl.u32 %v694, 5
    %v696 = vand.u32 %v694, 31
    %v697 = vsub.s32 32, %v696
    %v698 = vshrl.u32 683565275, %v697
    %v699 = vshll.u32 683565275, %v696
    %v700 = vshrl.u32 2475754826, %v697
    %v701 = vor.u32 %v699, %v700
    %v702 = vshll.u32 2475754826, %v696
    %v703 = vshrl.u32 2131351028, %v697
    %v704 = vor.u32 %v702, %v703
    %v705 = vshll.u32 2131351028, %v696
    %v706 = vshrl.u32 2102212464, %v697
    %v707 = vor.u32 %v705, %v706
    %v708 = vshll.u32 2102212464, %v696
    %v709 = vshrl.u32 920167782, %v697
    %v710 = vor.u32 %v708, %v709
    %v711 = vshll.u32 920167782, %v696
    %v712 = vshrl.u32 1326507024, %v697
    %v713 = vor.u32 %v711, %v712
    %vm714 = vcmp.lt.s32.totalorder %v695, 1
    %vm715 = vcmp.lt.s32.totalorder %v695, 2
    %vm716 = vcmp.lt.s32.totalorder %v695, 3
    %vm717 = vcmp.lt.s32.totalorder %v695, 4
    %v718 = vsel %vm714, %v698, %v701
    %v719 = vsel %vm717, %v707, 2102212464
    %v720 = vsel %vm716, %v704, %v719
    %v721 = vsel %vm715, %v718, %v720
    %v722 = vsel %vm714, %v701, %v704
    %v723 = vsel %vm717, %v710, 920167782
    %v724 = vsel %vm716, %v707, %v723
    %v725 = vsel %vm715, %v722, %v724
    %v726 = vsel %vm714, %v704, %v707
    %v727 = vsel %vm717, %v713, 1326507024
    %v728 = vsel %vm716, %v710, %v727
    %v729 = vsel %vm715, %v726, %v728
    %v730 = vshll.u32 %v690, 8
    %v731 = vand.u32 %v730, 65535
    %v732 = vshrl.u32 %v730, 16
    %v733 = vand.u32 %v729, 65535
    %v734 = vshrl.u32 %v729, 16
    %v735 = vmul.u32 %v731, %v733
    %v736 = vmul.u32 %v731, %v734
    %v737 = vmul.u32 %v732, %v733
    %v738 = vmul.u32 %v732, %v734
    %v739 = vshll.u32 %v736, 16
    %v740 = vshrl.u32 %v736, 16
    %v741 = vshll.u32 %v737, 16
    %v742 = vshrl.u32 %v737, 16
    %vm743 = vc.u32 %v735, %v739
    %v744 = vsel %vm743, 1, 0
    %v745 = vadd.s32 %v735, %v739
    %v746 = vadd.s32 %v738, %v744
    %vm747 = vc.u32 %v745, %v741
    %v748 = vsel %vm747, 1, 0
    %v749 = vadd.s32 %v745, %v741
    %v750 = vadd.s32 %v746, %v748
    %v751 = vadd.s32 %v750, %v740
    %v752 = vadd.s32 %v751, %v742
    %v753 = vand.u32 %v730, 65535
    %v754 = vshrl.u32 %v730, 16
    %v755 = vand.u32 %v725, 65535
    %v756 = vshrl.u32 %v725, 16
    %v757 = vmul.u32 %v753, %v755
    %v758 = vmul.u32 %v753, %v756
    %v759 = vmul.u32 %v754, %v755
    %v760 = vmul.u32 %v754, %v756
    %v761 = vshll.u32 %v758, 16
    %v762 = vshrl.u32 %v758, 16
    %v763 = vshll.u32 %v759, 16
    %v764 = vshrl.u32 %v759, 16
    %vm765 = vc.u32 %v757, %v761
    %v766 = vsel %vm765, 1, 0
    %v767 = vadd.s32 %v757, %v761
    %v768 = vadd.s32 %v760, %v766
    %vm769 = vc.u32 %v767, %v763
    %v770 = vsel %vm769, 1, 0
    %v771 = vadd.s32 %v767, %v763
    %v772 = vadd.s32 %v768, %v770
    %v773 = vadd.s32 %v772, %v762
    %v774 = vadd.s32 %v773, %v764
    %v775 = vmul.u32 %v730, %v721
    %v776 = vadd.s32 %v752, %v771
    %vm777 = vc.u32 %v752, %v771
    %v778 = vadd.s32 %v774, 1
    %v779 = vsel %vm777, %v778, %v774
    %v780 = vadd.s32 %v775, %v779
    %v781 = vadd.s32 %v780, 536870912
    %v782 = vshrl.u32 %v781, 30
    %v783 = vshll.u32 %v782, 30
    %v784 = vsub.s32 %v780, %v783
    %vm785 = vcmp.lt.s32.totalorder %v784, 0
    %v786 = vsub.s32 0, %v784
    %v787 = vsel %vm785, %v786, %v784
    %v788 = vclz %v787
    %v789 = vsub.s32 %v788, 2
    %vm790 = vcmp.gt.s32.totalorder 0, %v789
    %v791 = vsel %vm790, 0, %v789
    %v792 = vsub.s32 32, %v791
    %v793 = vshll.u32 %v784, %v791
    %v794 = vshrl.u32 %v776, %v792
    %v795 = vor.u32 %v793, %v794
    %v796 = vsub.s32 4294967266, %v791
    %v797 = vadd.s32 %v796, 127
    %v798 = vshll.u32 %v797, 23
    %v799 = vor.u32 4788187, %v798
    %v800 = vand.u32 2147483647, %v799
    %v802 = vcvt.s32.f32 %v795
    %v803 = vmul.f32 %v802, %v800
    %v804 = vxor.u32 %v803, 2147483648
    %v805 = vsel %vm684, %v804, %v803
    %v806 = vsub.s32 4, %v782
    %v807 = vsel %vm684, %v806, %v782
    %v808 = vsel %vm683, %v680, %v805
    %v809 = vsel %vm683, 0, %v807
    %v810 = vmul.f32 %v808, %v808
    %v811 = vmul.f32 %v810, -0.001358992
    %v812 = vadd.f32 %v811, 0.041655596
    %v813 = vmul.f32 %v810, %v812
    %v814 = vadd.f32 %v813, -0.4999988
    %v815 = vmul.f32 %v810, %v814
    %v816 = vadd.f32 1.0, %v815
    %v817 = vmul.f32 %v808, %v808
    %v818 = vmul.f32 %v817, -0.00019511016
    %v819 = vadd.f32 %v818, 0.008332121
    %v820 = vmul.f32 %v817, %v819
    %v821 = vadd.f32 %v820, -0.16666654
    %v822 = vmul.f32 %v817, %v821
    %v823 = vadd.f32 %v822, 1.0
    %v824 = vmul.f32 %v823, %v808
    %vm825 = vweird.f32 %v680
    %v826 = vadd.s32 %v809, 3
    %v827 = vand.u32 %v826, 3
    %vm828 = vcmp.lt.s32.totalorder %v827, 2
    %vm829 = vcmp.eq.s32.totalorder %v827, 0
    %v830 = vxor.u32 %v824, 2147483648
    %v831 = vsel %vm829, %v816, %v830
    %vm832 = vcmp.eq.s32.totalorder %v827, 2
    %v833 = vxor.u32 %v816, 2147483648
    %v834 = vsel %vm832, %v833, %v824
    %v835 = vsel %vm828, %v831, %v834
    %v836 = vsel %vm825, nan, %v835
    %v837 = vand.u32 2147483647, %v681
    %vm838 = vcmp.le.f32.partialorder %v837, 0.7853982
    %vm839 = vcmp.lt.s32.totalorder %v681, 0
    %v840 = vand.u32 %v681, 2139095040
    %v841 = vshrl.u32 %v840, 23
    %v842 = vsub.s32 %v841, 127
    %v843 = vand.u32 2147483647, %v681
    %v844 = vand.u32 %v843, 8388607
    %v845 = vor.u32 %v844, 8388608
    %v846 = vsub.s32 0, %v845
    %v847 = vadd.s32 %v842, 1
    %vm848 = vcmp.gt.s32.totalorder %v847, 0
    %v849 = vsel %vm848, %v847, 0
    %v850 = vshrl.u32 %v849, 5
    %v851 = vand.u32 %v849, 31
    %v852 = vsub.s32 32, %v851
    %v853 = vshrl.u32 683565275, %v852
    %v854 = vshll.u32 683565275, %v851
    %v855 = vshrl.u32 2475754826, %v852
    %v856 = vor.u32 %v854, %v855
    %v857 = vshll.u32 2475754826, %v851
    %v858 = vshrl.u32 2131351028, %v852
    %v859 = vor.u32 %v857, %v858
    %v860 = vshll.u32 2131351028, %v851
    %v861 = vshrl.u32 2102212464, %v852
    %v862 = vor.u32 %v860, %v861
    %v863 = vshll.u32 2102212464, %v851
    %v864 = vshrl.u32 920167782, %v852
    %v865 = vor.u32 %v863, %v864
    %v866 = vshll.u32 920167782, %v851
    %v867 = vshrl.u32 1326507024, %v852
    %v868 = vor.u32 %v866, %v867
    %vm869 = vcmp.lt.s32.totalorder %v850, 1
    %vm870 = vcmp.lt.s32.totalorder %v850, 2
    %vm871 = vcmp.lt.s32.totalorder %v850, 3
    %vm872 = vcmp.lt.s32.totalorder %v850, 4
    %v873 = vsel %vm869, %v853, %v856
    %v874 = vsel %vm872, %v862, 2102212464
    %v875 = vsel %vm871, %v859, %v874
    %v876 = vsel %vm870, %v873, %v875
    %v877 = vsel %vm869, %v856, %v859
    %v878 = vsel %vm872, %v865, 920167782
    %v879 = vsel %vm871, %v862, %v878
    %v880 = vsel %vm870, %v877, %v879
    %v881 = vsel %vm869, %v859, %v862
    %v882 = vsel %vm872, %v868, 1326507024
    %v883 = vsel %vm871, %v865, %v882
    %v884 = vsel %vm870, %v881, %v883
    %v885 = vshll.u32 %v845, 8
    %v886 = vand.u32 %v885, 65535
    %v887 = vshrl.u32 %v885, 16
    %v888 = vand.u32 %v884, 65535
    %v889 = vshrl.u32 %v884, 16
    %v890 = vmul.u32 %v886, %v888
    %v891 = vmul.u32 %v886, %v889
    %v892 = vmul.u32 %v887, %v888
    %v893 = vmul.u32 %v887, %v889
    %v894 = vshll.u32 %v891, 16
    %v895 = vshrl.u32 %v891, 16
    %v896 = vshll.u32 %v892, 16
    %v897 = vshrl.u32 %v892, 16
    %vm898 = vc.u32 %v890, %v894
    %v899 = vsel %vm898, 1, 0
    %v900 = vadd.s32 %v890, %v894
    %v901 = vadd.s32 %v893, %v899
    %vm902 = vc.u32 %v900, %v896
    %v903 = vsel %vm902, 1, 0
    %v904 = vadd.s32 %v900, %v896
    %v905 = vadd.s32 %v901, %v903
    %v906 = vadd.s32 %v905, %v895
    %v907 = vadd.s32 %v906, %v897
    %v908 = vand.u32 %v885, 65535
    %v909 = vshrl.u32 %v885, 16
    %v910 = vand.u32 %v880, 65535
    %v911 = vshrl.u32 %v880, 16
    %v912 = vmul.u32 %v908, %v910
    %v913 = vmul.u32 %v908, %v911
    %v914 = vmul.u32 %v909, %v910
    %v915 = vmul.u32 %v909, %v911
    %v916 = vshll.u32 %v913, 16
    %v917 = vshrl.u32 %v913, 16
    %v918 = vshll.u32 %v914, 16
    %v919 = vshrl.u32 %v914, 16
    %vm920 = vc.u32 %v912, %v916
    %v921 = vsel %vm920, 1, 0
    %v922 = vadd.s32 %v912, %v916
    %v923 = vadd.s32 %v915, %v921
    %vm924 = vc.u32 %v922, %v918
    %v925 = vsel %vm924, 1, 0
    %v926 = vadd.s32 %v922, %v918
    %v927 = vadd.s32 %v923, %v925
    %v928 = vadd.s32 %v927, %v917
    %v929 = vadd.s32 %v928, %v919
    %v930 = vmul.u32 %v885, %v876
    %v931 = vadd.s32 %v907, %v926
    %vm932 = vc.u32 %v907, %v926
    %v933 = vadd.s32 %v929, 1
    %v934 = vsel %vm932, %v933, %v929
    %v935 = vadd.s32 %v930, %v934
    %v936 = vadd.s32 %v935, 536870912
    %v937 = vshrl.u32 %v936, 30
    %v938 = vshll.u32 %v937, 30
    %v939 = vsub.s32 %v935, %v938
    %vm940 = vcmp.lt.s32.totalorder %v939, 0
    %v941 = vsub.s32 0, %v939
    %v942 = vsel %vm940, %v941, %v939
    %v943 = vclz %v942
    %v944 = vsub.s32 %v943, 2
    %vm945 = vcmp.gt.s32.totalorder 0, %v944
    %v946 = vsel %vm945, 0, %v944
    %v947 = vsub.s32 32, %v946
    %v948 = vshll.u32 %v939, %v946
    %v949 = vshrl.u32 %v931, %v947
    %v950 = vor.u32 %v948, %v949
    %v951 = vsub.s32 4294967266, %v946
    %v952 = vadd.s32 %v951, 127
    %v953 = vshll.u32 %v952, 23
    %v954 = vor.u32 4788187, %v953
    %v955 = vand.u32 2147483647, %v954
    %v957 = vcvt.s32.f32 %v950
    %v958 = vmul.f32 %v957, %v955
    %v959 = vxor.u32 %v958, 2147483648
    %v960 = vsel %vm839, %v959, %v958
    %v961 = vsub.s32 4, %v937
    %v962 = vsel %vm839, %v961, %v937
    %v963 = vsel %vm838, %v681, %v960
    %v964 = vsel %vm838, 0, %v962
    %v965 = vmul.f32 %v963, %v963
    %v966 = vmul.f32 %v965, -0.001358992
    %v967 = vadd.f32 %v966, 0.041655596
    %v968 = vmul.f32 %v965, %v967
    %v969 = vadd.f32 %v968, -0.4999988
    %v970 = vmul.f32 %v965, %v969
    %v971 = vadd.f32 1.0, %v970
    %v972 = vmul.f32 %v963, %v963
    %v973 = vmul.f32 %v972, -0.00019511016
    %v974 = vadd.f32 %v973, 0.008332121
    %v975 = vmul.f32 %v972, %v974
    %v976 = vadd.f32 %v975, -0.16666654
    %v977 = vmul.f32 %v972, %v976
    %v978 = vadd.f32 %v977, 1.0
    %v979 = vmul.f32 %v978, %v963
    %vm980 = vweird.f32 %v681
    %v981 = vadd.s32 %v964, 3
    %v982 = vand.u32 %v981, 3
    %vm983 = vcmp.lt.s32.totalorder %v982, 2
    %vm984 = vcmp.eq.s32.totalorder %v982, 0
    %v985 = vxor.u32 %v979, 2147483648
    %v986 = vsel %vm984, %v971, %v985
    %vm987 = vcmp.eq.s32.totalorder %v982, 2
    %v988 = vxor.u32 %v971, 2147483648
    %v989 = vsel %vm987, %v988, %v979
    %v990 = vsel %vm983, %v986, %v989
    %v991 = vsel %vm980, nan, %v990
    %v992 = vstv %s677
    %v993 = vmul.f32 %v992, %v836
    %v994 = vmul.f32 %v992, %v991
    %v995 = vadd.f32 %v675, %v993
    %v996 = vadd.f32 %v676, %v994
    %s997 = sld [smem:[#allocation2 + $0x9]]
    %s998 = sld [smem:[#allocation2 + $0x3]]
    %v999 = vstv %s998
    %v1000 = vmul.f32 %v999, %v41
    %v1001 = vmul.f32 %v999, %v42
    %v1002 = vand.u32 2147483647, %v1000
    %vm1003 = vcmp.le.f32.partialorder %v1002, 0.7853982
    %vm1004 = vcmp.lt.s32.totalorder %v1000, 0
    %v1005 = vand.u32 %v1000, 2139095040
    %v1006 = vshrl.u32 %v1005, 23
    %v1007 = vsub.s32 %v1006, 127
    %v1008 = vand.u32 2147483647, %v1000
    %v1009 = vand.u32 %v1008, 8388607
    %v1010 = vor.u32 %v1009, 8388608
    %v1011 = vsub.s32 0, %v1010
    %v1012 = vadd.s32 %v1007, 1
    %vm1013 = vcmp.gt.s32.totalorder %v1012, 0
    %v1014 = vsel %vm1013, %v1012, 0
    %v1015 = vshrl.u32 %v1014, 5
    %v1016 = vand.u32 %v1014, 31
    %v1017 = vsub.s32 32, %v1016
    %v1018 = vshrl.u32 683565275, %v1017
    %v1019 = vshll.u32 683565275, %v1016
    %v1020 = vshrl.u32 2475754826, %v1017
    %v1021 = vor.u32 %v1019, %v1020
    %v1022 = vshll.u32 2475754826, %v1016
    %v1023 = vshrl.u32 2131351028, %v1017
    %v1024 = vor.u32 %v1022, %v1023
    %v1025 = vshll.u32 2131351028, %v1016
    %v1026 = vshrl.u32 2102212464, %v1017
    %v1027 = vor.u32 %v1025, %v1026
    %v1028 = vshll.u32 2102212464, %v1016
    %v1029 = vshrl.u32 920167782, %v1017
    %v1030 = vor.u32 %v1028, %v1029
    %v1031 = vshll.u32 920167782, %v1016
    %v1032 = vshrl.u32 1326507024, %v1017
    %v1033 = vor.u32 %v1031, %v1032
    %vm1034 = vcmp.lt.s32.totalorder %v1015, 1
    %vm1035 = vcmp.lt.s32.totalorder %v1015, 2
    %vm1036 = vcmp.lt.s32.totalorder %v1015, 3
    %vm1037 = vcmp.lt.s32.totalorder %v1015, 4
    %v1038 = vsel %vm1034, %v1018, %v1021
    %v1039 = vsel %vm1037, %v1027, 2102212464
    %v1040 = vsel %vm1036, %v1024, %v1039
    %v1041 = vsel %vm1035, %v1038, %v1040
    %v1042 = vsel %vm1034, %v1021, %v1024
    %v1043 = vsel %vm1037, %v1030, 920167782
    %v1044 = vsel %vm1036, %v1027, %v1043
    %v1045 = vsel %vm1035, %v1042, %v1044
    %v1046 = vsel %vm1034, %v1024, %v1027
    %v1047 = vsel %vm1037, %v1033, 1326507024
    %v1048 = vsel %vm1036, %v1030, %v1047
    %v1049 = vsel %vm1035, %v1046, %v1048
    %v1050 = vshll.u32 %v1010, 8
    %v1051 = vand.u32 %v1050, 65535
    %v1052 = vshrl.u32 %v1050, 16
    %v1053 = vand.u32 %v1049, 65535
    %v1054 = vshrl.u32 %v1049, 16
    %v1055 = vmul.u32 %v1051, %v1053
    %v1056 = vmul.u32 %v1051, %v1054
    %v1057 = vmul.u32 %v1052, %v1053
    %v1058 = vmul.u32 %v1052, %v1054
    %v1059 = vshll.u32 %v1056, 16
    %v1060 = vshrl.u32 %v1056, 16
    %v1061 = vshll.u32 %v1057, 16
    %v1062 = vshrl.u32 %v1057, 16
    %vm1063 = vc.u32 %v1055, %v1059
    %v1064 = vsel %vm1063, 1, 0
    %v1065 = vadd.s32 %v1055, %v1059
    %v1066 = vadd.s32 %v1058, %v1064
    %vm1067 = vc.u32 %v1065, %v1061
    %v1068 = vsel %vm1067, 1, 0
    %v1069 = vadd.s32 %v1065, %v1061
    %v1070 = vadd.s32 %v1066, %v1068
    %v1071 = vadd.s32 %v1070, %v1060
    %v1072 = vadd.s32 %v1071, %v1062
    %v1073 = vand.u32 %v1050, 65535
    %v1074 = vshrl.u32 %v1050, 16
    %v1075 = vand.u32 %v1045, 65535
    %v1076 = vshrl.u32 %v1045, 16
    %v1077 = vmul.u32 %v1073, %v1075
    %v1078 = vmul.u32 %v1073, %v1076
    %v1079 = vmul.u32 %v1074, %v1075
    %v1080 = vmul.u32 %v1074, %v1076
    %v1081 = vshll.u32 %v1078, 16
    %v1082 = vshrl.u32 %v1078, 16
    %v1083 = vshll.u32 %v1079, 16
    %v1084 = vshrl.u32 %v1079, 16
    %vm1085 = vc.u32 %v1077, %v1081
    %v1086 = vsel %vm1085, 1, 0
    %v1087 = vadd.s32 %v1077, %v1081
    %v1088 = vadd.s32 %v1080, %v1086
    %vm1089 = vc.u32 %v1087, %v1083
    %v1090 = vsel %vm1089, 1, 0
    %v1091 = vadd.s32 %v1087, %v1083
    %v1092 = vadd.s32 %v1088, %v1090
    %v1093 = vadd.s32 %v1092, %v1082
    %v1094 = vadd.s32 %v1093, %v1084
    %v1095 = vmul.u32 %v1050, %v1041
    %v1096 = vadd.s32 %v1072, %v1091
    %vm1097 = vc.u32 %v1072, %v1091
    %v1098 = vadd.s32 %v1094, 1
    %v1099 = vsel %vm1097, %v1098, %v1094
    %v1100 = vadd.s32 %v1095, %v1099
    %v1101 = vadd.s32 %v1100, 536870912
    %v1102 = vshrl.u32 %v1101, 30
    %v1103 = vshll.u32 %v1102, 30
    %v1104 = vsub.s32 %v1100, %v1103
    %vm1105 = vcmp.lt.s32.totalorder %v1104, 0
    %v1106 = vsub.s32 0, %v1104
    %v1107 = vsel %vm1105, %v1106, %v1104
    %v1108 = vclz %v1107
    %v1109 = vsub.s32 %v1108, 2
    %vm1110 = vcmp.gt.s32.totalorder 0, %v1109
    %v1111 = vsel %vm1110, 0, %v1109
    %v1112 = vsub.s32 32, %v1111
    %v1113 = vshll.u32 %v1104, %v1111
    %v1114 = vshrl.u32 %v1096, %v1112
    %v1115 = vor.u32 %v1113, %v1114
    %v1116 = vsub.s32 4294967266, %v1111
    %v1117 = vadd.s32 %v1116, 127
    %v1118 = vshll.u32 %v1117, 23
    %v1119 = vor.u32 4788187, %v1118
    %v1120 = vand.u32 2147483647, %v1119
    %v1122 = vcvt.s32.f32 %v1115
    %v1123 = vmul.f32 %v1122, %v1120
    %v1124 = vxor.u32 %v1123, 2147483648
    %v1125 = vsel %vm1004, %v1124, %v1123
    %v1126 = vsub.s32 4, %v1102
    %v1127 = vsel %vm1004, %v1126, %v1102
    %v1128 = vsel %vm1003, %v1000, %v1125
    %v1129 = vsel %vm1003, 0, %v1127
    %v1130 = vmul.f32 %v1128, %v1128
    %v1131 = vmul.f32 %v1130, -0.001358992
    %v1132 = vadd.f32 %v1131, 0.041655596
    %v1133 = vmul.f32 %v1130, %v1132
    %v1134 = vadd.f32 %v1133, -0.4999988
    %v1135 = vmul.f32 %v1130, %v1134
    %v1136 = vadd.f32 1.0, %v1135
    %v1137 = vmul.f32 %v1128, %v1128
    %v1138 = vmul.f32 %v1137, -0.00019511016
    %v1139 = vadd.f32 %v1138, 0.008332121
    %v1140 = vmul.f32 %v1137, %v1139
    %v1141 = vadd.f32 %v1140, -0.16666654
    %v1142 = vmul.f32 %v1137, %v1141
    %v1143 = vadd.f32 %v1142, 1.0
    %v1144 = vmul.f32 %v1143, %v1128
    %vm1145 = vweird.f32 %v1000
    %v1146 = vadd.s32 %v1129, 3
    %v1147 = vand.u32 %v1146, 3
    %vm1148 = vcmp.lt.s32.totalorder %v1147, 2
    %vm1149 = vcmp.eq.s32.totalorder %v1147, 0
    %v1150 = vxor.u32 %v1144, 2147483648
    %v1151 = vsel %vm1149, %v1136, %v1150
    %vm1152 = vcmp.eq.s32.totalorder %v1147, 2
    %v1153 = vxor.u32 %v1136, 2147483648
    %v1154 = vsel %vm1152, %v1153, %v1144
    %v1155 = vsel %vm1148, %v1151, %v1154
    %v1156 = vsel %vm1145, nan, %v1155
    %v1157 = vand.u32 2147483647, %v1001
    %vm1158 = vcmp.le.f32.partialorder %v1157, 0.7853982
    %vm1159 = vcmp.lt.s32.totalorder %v1001, 0
    %v1160 = vand.u32 %v1001, 2139095040
    %v1161 = vshrl.u32 %v1160, 23
    %v1162 = vsub.s32 %v1161, 127
    %v1163 = vand.u32 2147483647, %v1001
    %v1164 = vand.u32 %v1163, 8388607
    %v1165 = vor.u32 %v1164, 8388608
    %v1166 = vsub.s32 0, %v1165
    %v1167 = vadd.s32 %v1162, 1
    %vm1168 = vcmp.gt.s32.totalorder %v1167, 0
    %v1169 = vsel %vm1168, %v1167, 0
    %v1170 = vshrl.u32 %v1169, 5
    %v1171 = vand.u32 %v1169, 31
    %v1172 = vsub.s32 32, %v1171
    %v1173 = vshrl.u32 683565275, %v1172
    %v1174 = vshll.u32 683565275, %v1171
    %v1175 = vshrl.u32 2475754826, %v1172
    %v1176 = vor.u32 %v1174, %v1175
    %v1177 = vshll.u32 2475754826, %v1171
    %v1178 = vshrl.u32 2131351028, %v1172
    %v1179 = vor.u32 %v1177, %v1178
    %v1180 = vshll.u32 2131351028, %v1171
    %v1181 = vshrl.u32 2102212464, %v1172
    %v1182 = vor.u32 %v1180, %v1181
    %v1183 = vshll.u32 2102212464, %v1171
    %v1184 = vshrl.u32 920167782, %v1172
    %v1185 = vor.u32 %v1183, %v1184
    %v1186 = vshll.u32 920167782, %v1171
    %v1187 = vshrl.u32 1326507024, %v1172
    %v1188 = vor.u32 %v1186, %v1187
    %vm1189 = vcmp.lt.s32.totalorder %v1170, 1
    %vm1190 = vcmp.lt.s32.totalorder %v1170, 2
    %vm1191 = vcmp.lt.s32.totalorder %v1170, 3
    %vm1192 = vcmp.lt.s32.totalorder %v1170, 4
    %v1193 = vsel %vm1189, %v1173, %v1176
    %v1194 = vsel %vm1192, %v1182, 2102212464
    %v1195 = vsel %vm1191, %v1179, %v1194
    %v1196 = vsel %vm1190, %v1193, %v1195
    %v1197 = vsel %vm1189, %v1176, %v1179
    %v1198 = vsel %vm1192, %v1185, 920167782
    %v1199 = vsel %vm1191, %v1182, %v1198
    %v1200 = vsel %vm1190, %v1197, %v1199
    %v1201 = vsel %vm1189, %v1179, %v1182
    %v1202 = vsel %vm1192, %v1188, 1326507024
    %v1203 = vsel %vm1191, %v1185, %v1202
    %v1204 = vsel %vm1190, %v1201, %v1203
    %v1205 = vshll.u32 %v1165, 8
    %v1206 = vand.u32 %v1205, 65535
    %v1207 = vshrl.u32 %v1205, 16
    %v1208 = vand.u32 %v1204, 65535
    %v1209 = vshrl.u32 %v1204, 16
    %v1210 = vmul.u32 %v1206, %v1208
    %v1211 = vmul.u32 %v1206, %v1209
    %v1212 = vmul.u32 %v1207, %v1208
    %v1213 = vmul.u32 %v1207, %v1209
    %v1214 = vshll.u32 %v1211, 16
    %v1215 = vshrl.u32 %v1211, 16
    %v1216 = vshll.u32 %v1212, 16
    %v1217 = vshrl.u32 %v1212, 16
    %vm1218 = vc.u32 %v1210, %v1214
    %v1219 = vsel %vm1218, 1, 0
    %v1220 = vadd.s32 %v1210, %v1214
    %v1221 = vadd.s32 %v1213, %v1219
    %vm1222 = vc.u32 %v1220, %v1216
    %v1223 = vsel %vm1222, 1, 0
    %v1224 = vadd.s32 %v1220, %v1216
    %v1225 = vadd.s32 %v1221, %v1223
    %v1226 = vadd.s32 %v1225, %v1215
    %v1227 = vadd.s32 %v1226, %v1217
    %v1228 = vand.u32 %v1205, 65535
    %v1229 = vshrl.u32 %v1205, 16
    %v1230 = vand.u32 %v1200, 65535
    %v1231 = vshrl.u32 %v1200, 16
    %v1232 = vmul.u32 %v1228, %v1230
    %v1233 = vmul.u32 %v1228, %v1231
    %v1234 = vmul.u32 %v1229, %v1230
    %v1235 = vmul.u32 %v1229, %v1231
    %v1236 = vshll.u32 %v1233, 16
    %v1237 = vshrl.u32 %v1233, 16
    %v1238 = vshll.u32 %v1234, 16
    %v1239 = vshrl.u32 %v1234, 16
    %vm1240 = vc.u32 %v1232, %v1236
    %v1241 = vsel %vm1240, 1, 0
    %v1242 = vadd.s32 %v1232, %v1236
    %v1243 = vadd.s32 %v1235, %v1241
    %vm1244 = vc.u32 %v1242, %v1238
    %v1245 = vsel %vm1244, 1, 0
    %v1246 = vadd.s32 %v1242, %v1238
    %v1247 = vadd.s32 %v1243, %v1245
    %v1248 = vadd.s32 %v1247, %v1237
    %v1249 = vadd.s32 %v1248, %v1239
    %v1250 = vmul.u32 %v1205, %v1196
    %v1251 = vadd.s32 %v1227, %v1246
    %vm1252 = vc.u32 %v1227, %v1246
    %v1253 = vadd.s32 %v1249, 1
    %v1254 = vsel %vm1252, %v1253, %v1249
    %v1255 = vadd.s32 %v1250, %v1254
    %v1256 = vadd.s32 %v1255, 536870912
    %v1257 = vshrl.u32 %v1256, 30
    %v1258 = vshll.u32 %v1257, 30
    %v1259 = vsub.s32 %v1255, %v1258
    %vm1260 = vcmp.lt.s32.totalorder %v1259, 0
    %v1261 = vsub.s32 0, %v1259
    %v1262 = vsel %vm1260, %v1261, %v1259
    %v1263 = vclz %v1262
    %v1264 = vsub.s32 %v1263, 2
    %vm1265 = vcmp.gt.s32.totalorder 0, %v1264
    %v1266 = vsel %vm1265, 0, %v1264
    %v1267 = vsub.s32 32, %v1266
    %v1268 = vshll.u32 %v1259, %v1266
    %v1269 = vshrl.u32 %v1251, %v1267
    %v1270 = vor.u32 %v1268, %v1269
    %v1271 = vsub.s32 4294967266, %v1266
    %v1272 = vadd.s32 %v1271, 127
    %v1273 = vshll.u32 %v1272, 23
    %v1274 = vor.u32 4788187, %v1273
    %v1275 = vand.u32 2147483647, %v1274
    %v1277 = vcvt.s32.f32 %v1270
    %v1278 = vmul.f32 %v1277, %v1275
    %v1279 = vxor.u32 %v1278, 2147483648
    %v1280 = vsel %vm1159, %v1279, %v1278
    %v1281 = vsub.s32 4, %v1257
    %v1282 = vsel %vm1159, %v1281, %v1257
    %v1283 = vsel %vm1158, %v1001, %v1280
    %v1284 = vsel %vm1158, 0, %v1282
    %v1285 = vmul.f32 %v1283, %v1283
    %v1286 = vmul.f32 %v1285, -0.001358992
    %v1287 = vadd.f32 %v1286, 0.041655596
    %v1288 = vmul.f32 %v1285, %v1287
    %v1289 = vadd.f32 %v1288, -0.4999988
    %v1290 = vmul.f32 %v1285, %v1289
    %v1291 = vadd.f32 1.0, %v1290
    %v1292 = vmul.f32 %v1283, %v1283
    %v1293 = vmul.f32 %v1292, -0.00019511016
    %v1294 = vadd.f32 %v1293, 0.008332121
    %v1295 = vmul.f32 %v1292, %v1294
    %v1296 = vadd.f32 %v1295, -0.16666654
    %v1297 = vmul.f32 %v1292, %v1296
    %v1298 = vadd.f32 %v1297, 1.0
    %v1299 = vmul.f32 %v1298, %v1283
    %vm1300 = vweird.f32 %v1001
    %v1301 = vadd.s32 %v1284, 3
    %v1302 = vand.u32 %v1301, 3
    %vm1303 = vcmp.lt.s32.totalorder %v1302, 2
    %vm1304 = vcmp.eq.s32.totalorder %v1302, 0
    %v1305 = vxor.u32 %v1299, 2147483648
    %v1306 = vsel %vm1304, %v1291, %v1305
    %vm1307 = vcmp.eq.s32.totalorder %v1302, 2
    %v1308 = vxor.u32 %v1291, 2147483648
    %v1309 = vsel %vm1307, %v1308, %v1299
    %v1310 = vsel %vm1303, %v1306, %v1309
    %v1311 = vsel %vm1300, nan, %v1310
    %v1312 = vstv %s997
    %v1313 = vmul.f32 %v1312, %v1156
    %v1314 = vmul.f32 %v1312, %v1311
    %v1315 = vadd.f32 %v995, %v1313
    %v1316 = vadd.f32 %v996, %v1314
    %s1317 = sld [smem:[#allocation2 + $0xa]]
    %s1318 = sld [smem:[#allocation2 + $0x4]]
    %v1319 = vstv %s1318
    %v1320 = vmul.f32 %v1319, %v41
    %v1321 = vmul.f32 %v1319, %v42
    %v1322 = vand.u32 2147483647, %v1320
    %vm1323 = vcmp.le.f32.partialorder %v1322, 0.7853982
    %vm1324 = vcmp.lt.s32.totalorder %v1320, 0
    %v1325 = vand.u32 %v1320, 2139095040
    %v1326 = vshrl.u32 %v1325, 23
    %v1327 = vsub.s32 %v1326, 127
    %v1328 = vand.u32 2147483647, %v1320
    %v1329 = vand.u32 %v1328, 8388607
    %v1330 = vor.u32 %v1329, 8388608
    %v1331 = vsub.s32 0, %v1330
    %v1332 = vadd.s32 %v1327, 1
    %vm1333 = vcmp.gt.s32.totalorder %v1332, 0
    %v1334 = vsel %vm1333, %v1332, 0
    %v1335 = vshrl.u32 %v1334, 5
    %v1336 = vand.u32 %v1334, 31
    %v1337 = vsub.s32 32, %v1336
    %v1338 = vshrl.u32 683565275, %v1337
    %v1339 = vshll.u32 683565275, %v1336
    %v1340 = vshrl.u32 2475754826, %v1337
    %v1341 = vor.u32 %v1339, %v1340
    %v1342 = vshll.u32 2475754826, %v1336
    %v1343 = vshrl.u32 2131351028, %v1337
    %v1344 = vor.u32 %v1342, %v1343
    %v1345 = vshll.u32 2131351028, %v1336
    %v1346 = vshrl.u32 2102212464, %v1337
    %v1347 = vor.u32 %v1345, %v1346
    %v1348 = vshll.u32 2102212464, %v1336
    %v1349 = vshrl.u32 920167782, %v1337
    %v1350 = vor.u32 %v1348, %v1349
    %v1351 = vshll.u32 920167782, %v1336
    %v1352 = vshrl.u32 1326507024, %v1337
    %v1353 = vor.u32 %v1351, %v1352
    %vm1354 = vcmp.lt.s32.totalorder %v1335, 1
    %vm1355 = vcmp.lt.s32.totalorder %v1335, 2
    %vm1356 = vcmp.lt.s32.totalorder %v1335, 3
    %vm1357 = vcmp.lt.s32.totalorder %v1335, 4
    %v1358 = vsel %vm1354, %v1338, %v1341
    %v1359 = vsel %vm1357, %v1347, 2102212464
    %v1360 = vsel %vm1356, %v1344, %v1359
    %v1361 = vsel %vm1355, %v1358, %v1360
    %v1362 = vsel %vm1354, %v1341, %v1344
    %v1363 = vsel %vm1357, %v1350, 920167782
    %v1364 = vsel %vm1356, %v1347, %v1363
    %v1365 = vsel %vm1355, %v1362, %v1364
    %v1366 = vsel %vm1354, %v1344, %v1347
    %v1367 = vsel %vm1357, %v1353, 1326507024
    %v1368 = vsel %vm1356, %v1350, %v1367
    %v1369 = vsel %vm1355, %v1366, %v1368
    %v1370 = vshll.u32 %v1330, 8
    %v1371 = vand.u32 %v1370, 65535
    %v1372 = vshrl.u32 %v1370, 16
    %v1373 = vand.u32 %v1369, 65535
    %v1374 = vshrl.u32 %v1369, 16
    %v1375 = vmul.u32 %v1371, %v1373
    %v1376 = vmul.u32 %v1371, %v1374
    %v1377 = vmul.u32 %v1372, %v1373
    %v1378 = vmul.u32 %v1372, %v1374
    %v1379 = vshll.u32 %v1376, 16
    %v1380 = vshrl.u32 %v1376, 16
    %v1381 = vshll.u32 %v1377, 16
    %v1382 = vshrl.u32 %v1377, 16
    %vm1383 = vc.u32 %v1375, %v1379
    %v1384 = vsel %vm1383, 1, 0
    %v1385 = vadd.s32 %v1375, %v1379
    %v1386 = vadd.s32 %v1378, %v1384
    %vm1387 = vc.u32 %v1385, %v1381
    %v1388 = vsel %vm1387, 1, 0
    %v1389 = vadd.s32 %v1385, %v1381
    %v1390 = vadd.s32 %v1386, %v1388
    %v1391 = vadd.s32 %v1390, %v1380
    %v1392 = vadd.s32 %v1391, %v1382
    %v1393 = vand.u32 %v1370, 65535
    %v1394 = vshrl.u32 %v1370, 16
    %v1395 = vand.u32 %v1365, 65535
    %v1396 = vshrl.u32 %v1365, 16
    %v1397 = vmul.u32 %v1393, %v1395
    %v1398 = vmul.u32 %v1393, %v1396
    %v1399 = vmul.u32 %v1394, %v1395
    %v1400 = vmul.u32 %v1394, %v1396
    %v1401 = vshll.u32 %v1398, 16
    %v1402 = vshrl.u32 %v1398, 16
    %v1403 = vshll.u32 %v1399, 16
    %v1404 = vshrl.u32 %v1399, 16
    %vm1405 = vc.u32 %v1397, %v1401
    %v1406 = vsel %vm1405, 1, 0
    %v1407 = vadd.s32 %v1397, %v1401
    %v1408 = vadd.s32 %v1400, %v1406
    %vm1409 = vc.u32 %v1407, %v1403
    %v1410 = vsel %vm1409, 1, 0
    %v1411 = vadd.s32 %v1407, %v1403
    %v1412 = vadd.s32 %v1408, %v1410
    %v1413 = vadd.s32 %v1412, %v1402
    %v1414 = vadd.s32 %v1413, %v1404
    %v1415 = vmul.u32 %v1370, %v1361
    %v1416 = vadd.s32 %v1392, %v1411
    %vm1417 = vc.u32 %v1392, %v1411
    %v1418 = vadd.s32 %v1414, 1
    %v1419 = vsel %vm1417, %v1418, %v1414
    %v1420 = vadd.s32 %v1415, %v1419
    %v1421 = vadd.s32 %v1420, 536870912
    %v1422 = vshrl.u32 %v1421, 30
    %v1423 = vshll.u32 %v1422, 30
    %v1424 = vsub.s32 %v1420, %v1423
    %vm1425 = vcmp.lt.s32.totalorder %v1424, 0
    %v1426 = vsub.s32 0, %v1424
    %v1427 = vsel %vm1425, %v1426, %v1424
    %v1428 = vclz %v1427
    %v1429 = vsub.s32 %v1428, 2
    %vm1430 = vcmp.gt.s32.totalorder 0, %v1429
    %v1431 = vsel %vm1430, 0, %v1429
    %v1432 = vsub.s32 32, %v1431
    %v1433 = vshll.u32 %v1424, %v1431
    %v1434 = vshrl.u32 %v1416, %v1432
    %v1435 = vor.u32 %v1433, %v1434
    %v1436 = vsub.s32 4294967266, %v1431
    %v1437 = vadd.s32 %v1436, 127
    %v1438 = vshll.u32 %v1437, 23
    %v1439 = vor.u32 4788187, %v1438
    %v1440 = vand.u32 2147483647, %v1439
    %v1442 = vcvt.s32.f32 %v1435
    %v1443 = vmul.f32 %v1442, %v1440
    %v1444 = vxor.u32 %v1443, 2147483648
    %v1445 = vsel %vm1324, %v1444, %v1443
    %v1446 = vsub.s32 4, %v1422
    %v1447 = vsel %vm1324, %v1446, %v1422
    %v1448 = vsel %vm1323, %v1320, %v1445
    %v1449 = vsel %vm1323, 0, %v1447
    %v1450 = vmul.f32 %v1448, %v1448
    %v1451 = vmul.f32 %v1450, -0.001358992
    %v1452 = vadd.f32 %v1451, 0.041655596
    %v1453 = vmul.f32 %v1450, %v1452
    %v1454 = vadd.f32 %v1453, -0.4999988
    %v1455 = vmul.f32 %v1450, %v1454
    %v1456 = vadd.f32 1.0, %v1455
    %v1457 = vmul.f32 %v1448, %v1448
    %v1458 = vmul.f32 %v1457, -0.00019511016
    %v1459 = vadd.f32 %v1458, 0.008332121
    %v1460 = vmul.f32 %v1457, %v1459
    %v1461 = vadd.f32 %v1460, -0.16666654
    %v1462 = vmul.f32 %v1457, %v1461
    %v1463 = vadd.f32 %v1462, 1.0
    %v1464 = vmul.f32 %v1463, %v1448
    %vm1465 = vweird.f32 %v1320
    %v1466 = vadd.s32 %v1449, 3
    %v1467 = vand.u32 %v1466, 3
    %vm1468 = vcmp.lt.s32.totalorder %v1467, 2
    %vm1469 = vcmp.eq.s32.totalorder %v1467, 0
    %v1470 = vxor.u32 %v1464, 2147483648
    %v1471 = vsel %vm1469, %v1456, %v1470
    %vm1472 = vcmp.eq.s32.totalorder %v1467, 2
    %v1473 = vxor.u32 %v1456, 2147483648
    %v1474 = vsel %vm1472, %v1473, %v1464
    %v1475 = vsel %vm1468, %v1471, %v1474
    %v1476 = vsel %vm1465, nan, %v1475
    %v1477 = vand.u32 2147483647, %v1321
    %vm1478 = vcmp.le.f32.partialorder %v1477, 0.7853982
    %vm1479 = vcmp.lt.s32.totalorder %v1321, 0
    %v1480 = vand.u32 %v1321, 2139095040
    %v1481 = vshrl.u32 %v1480, 23
    %v1482 = vsub.s32 %v1481, 127
    %v1483 = vand.u32 2147483647, %v1321
    %v1484 = vand.u32 %v1483, 8388607
    %v1485 = vor.u32 %v1484, 8388608
    %v1486 = vsub.s32 0, %v1485
    %v1487 = vadd.s32 %v1482, 1
    %vm1488 = vcmp.gt.s32.totalorder %v1487, 0
    %v1489 = vsel %vm1488, %v1487, 0
    %v1490 = vshrl.u32 %v1489, 5
    %v1491 = vand.u32 %v1489, 31
    %v1492 = vsub.s32 32, %v1491
    %v1493 = vshrl.u32 683565275, %v1492
    %v1494 = vshll.u32 683565275, %v1491
    %v1495 = vshrl.u32 2475754826, %v1492
    %v1496 = vor.u32 %v1494, %v1495
    %v1497 = vshll.u32 2475754826, %v1491
    %v1498 = vshrl.u32 2131351028, %v1492
    %v1499 = vor.u32 %v1497, %v1498
    %v1500 = vshll.u32 2131351028, %v1491
    %v1501 = vshrl.u32 2102212464, %v1492
    %v1502 = vor.u32 %v1500, %v1501
    %v1503 = vshll.u32 2102212464, %v1491
    %v1504 = vshrl.u32 920167782, %v1492
    %v1505 = vor.u32 %v1503, %v1504
    %v1506 = vshll.u32 920167782, %v1491
    %v1507 = vshrl.u32 1326507024, %v1492
    %v1508 = vor.u32 %v1506, %v1507
    %vm1509 = vcmp.lt.s32.totalorder %v1490, 1
    %vm1510 = vcmp.lt.s32.totalorder %v1490, 2
    %vm1511 = vcmp.lt.s32.totalorder %v1490, 3
    %vm1512 = vcmp.lt.s32.totalorder %v1490, 4
    %v1513 = vsel %vm1509, %v1493, %v1496
    %v1514 = vsel %vm1512, %v1502, 2102212464
    %v1515 = vsel %vm1511, %v1499, %v1514
    %v1516 = vsel %vm1510, %v1513, %v1515
    %v1517 = vsel %vm1509, %v1496, %v1499
    %v1518 = vsel %vm1512, %v1505, 920167782
    %v1519 = vsel %vm1511, %v1502, %v1518
    %v1520 = vsel %vm1510, %v1517, %v1519
    %v1521 = vsel %vm1509, %v1499, %v1502
    %v1522 = vsel %vm1512, %v1508, 1326507024
    %v1523 = vsel %vm1511, %v1505, %v1522
    %v1524 = vsel %vm1510, %v1521, %v1523
    %v1525 = vshll.u32 %v1485, 8
    %v1526 = vand.u32 %v1525, 65535
    %v1527 = vshrl.u32 %v1525, 16
    %v1528 = vand.u32 %v1524, 65535
    %v1529 = vshrl.u32 %v1524, 16
    %v1530 = vmul.u32 %v1526, %v1528
    %v1531 = vmul.u32 %v1526, %v1529
    %v1532 = vmul.u32 %v1527, %v1528
    %v1533 = vmul.u32 %v1527, %v1529
    %v1534 = vshll.u32 %v1531, 16
    %v1535 = vshrl.u32 %v1531, 16
    %v1536 = vshll.u32 %v1532, 16
    %v1537 = vshrl.u32 %v1532, 16
    %vm1538 = vc.u32 %v1530, %v1534
    %v1539 = vsel %vm1538, 1, 0
    %v1540 = vadd.s32 %v1530, %v1534
    %v1541 = vadd.s32 %v1533, %v1539
    %vm1542 = vc.u32 %v1540, %v1536
    %v1543 = vsel %vm1542, 1, 0
    %v1544 = vadd.s32 %v1540, %v1536
    %v1545 = vadd.s32 %v1541, %v1543
    %v1546 = vadd.s32 %v1545, %v1535
    %v1547 = vadd.s32 %v1546, %v1537
    %v1548 = vand.u32 %v1525, 65535
    %v1549 = vshrl.u32 %v1525, 16
    %v1550 = vand.u32 %v1520, 65535
    %v1551 = vshrl.u32 %v1520, 16
    %v1552 = vmul.u32 %v1548, %v1550
    %v1553 = vmul.u32 %v1548, %v1551
    %v1554 = vmul.u32 %v1549, %v1550
    %v1555 = vmul.u32 %v1549, %v1551
    %v1556 = vshll.u32 %v1553, 16
    %v1557 = vshrl.u32 %v1553, 16
    %v1558 = vshll.u32 %v1554, 16
    %v1559 = vshrl.u32 %v1554, 16
    %vm1560 = vc.u32 %v1552, %v1556
    %v1561 = vsel %vm1560, 1, 0
    %v1562 = vadd.s32 %v1552, %v1556
    %v1563 = vadd.s32 %v1555, %v1561
    %vm1564 = vc.u32 %v1562, %v1558
    %v1565 = vsel %vm1564, 1, 0
    %v1566 = vadd.s32 %v1562, %v1558
    %v1567 = vadd.s32 %v1563, %v1565
    %v1568 = vadd.s32 %v1567, %v1557
    %v1569 = vadd.s32 %v1568, %v1559
    %v1570 = vmul.u32 %v1525, %v1516
    %v1571 = vadd.s32 %v1547, %v1566
    %vm1572 = vc.u32 %v1547, %v1566
    %v1573 = vadd.s32 %v1569, 1
    %v1574 = vsel %vm1572, %v1573, %v1569
    %v1575 = vadd.s32 %v1570, %v1574
    %v1576 = vadd.s32 %v1575, 536870912
    %v1577 = vshrl.u32 %v1576, 30
    %v1578 = vshll.u32 %v1577, 30
    %v1579 = vsub.s32 %v1575, %v1578
    %vm1580 = vcmp.lt.s32.totalorder %v1579, 0
    %v1581 = vsub.s32 0, %v1579
    %v1582 = vsel %vm1580, %v1581, %v1579
    %v1583 = vclz %v1582
    %v1584 = vsub.s32 %v1583, 2
    %vm1585 = vcmp.gt.s32.totalorder 0, %v1584
    %v1586 = vsel %vm1585, 0, %v1584
    %v1587 = vsub.s32 32, %v1586
    %v1588 = vshll.u32 %v1579, %v1586
    %v1589 = vshrl.u32 %v1571, %v1587
    %v1590 = vor.u32 %v1588, %v1589
    %v1591 = vsub.s32 4294967266, %v1586
    %v1592 = vadd.s32 %v1591, 127
    %v1593 = vshll.u32 %v1592, 23
    %v1594 = vor.u32 4788187, %v1593
    %v1595 = vand.u32 2147483647, %v1594
    %v1597 = vcvt.s32.f32 %v1590
    %v1598 = vmul.f32 %v1597, %v1595
    %v1599 = vxor.u32 %v1598, 2147483648
    %v1600 = vsel %vm1479, %v1599, %v1598
    %v1601 = vsub.s32 4, %v1577
    %v1602 = vsel %vm1479, %v1601, %v1577
    %v1603 = vsel %vm1478, %v1321, %v1600
    %v1604 = vsel %vm1478, 0, %v1602
    %v1605 = vmul.f32 %v1603, %v1603
    %v1606 = vmul.f32 %v1605, -0.001358992
    %v1607 = vadd.f32 %v1606, 0.041655596
    %v1608 = vmul.f32 %v1605, %v1607
    %v1609 = vadd.f32 %v1608, -0.4999988
    %v1610 = vmul.f32 %v1605, %v1609
    %v1611 = vadd.f32 1.0, %v1610
    %v1612 = vmul.f32 %v1603, %v1603
    %v1613 = vmul.f32 %v1612, -0.00019511016
    %v1614 = vadd.f32 %v1613, 0.008332121
    %v1615 = vmul.f32 %v1612, %v1614
    %v1616 = vadd.f32 %v1615, -0.16666654
    %v1617 = vmul.f32 %v1612, %v1616
    %v1618 = vadd.f32 %v1617, 1.0
    %v1619 = vmul.f32 %v1618, %v1603
    %vm1620 = vweird.f32 %v1321
    %v1621 = vadd.s32 %v1604, 3
    %v1622 = vand.u32 %v1621, 3
    %vm1623 = vcmp.lt.s32.totalorder %v1622, 2
    %vm1624 = vcmp.eq.s32.totalorder %v1622, 0
    %v1625 = vxor.u32 %v1619, 2147483648
    %v1626 = vsel %vm1624, %v1611, %v1625
    %vm1627 = vcmp.eq.s32.totalorder %v1622, 2
    %v1628 = vxor.u32 %v1611, 2147483648
    %v1629 = vsel %vm1627, %v1628, %v1619
    %v1630 = vsel %vm1623, %v1626, %v1629
    %v1631 = vsel %vm1620, nan, %v1630
    %v1632 = vstv %s1317
    %v1633 = vmul.f32 %v1632, %v1476
    %v1634 = vmul.f32 %v1632, %v1631
    %v1635 = vadd.f32 %v1315, %v1633
    %v1636 = vadd.f32 %v1316, %v1634
    %s1637 = sld [smem:[#allocation2 + $0xb]]
    %s1638 = sld [smem:[#allocation2 + $0x5]]
    %v1639 = vstv %s1638
    %v1640 = vmul.f32 %v1639, %v41
    %v1641 = vmul.f32 %v1639, %v42
    %v1642 = vand.u32 2147483647, %v1640
    %vm1643 = vcmp.le.f32.partialorder %v1642, 0.7853982
    %vm1644 = vcmp.lt.s32.totalorder %v1640, 0
    %v1645 = vand.u32 %v1640, 2139095040
    %v1646 = vshrl.u32 %v1645, 23
    %v1647 = vsub.s32 %v1646, 127
    %v1648 = vand.u32 2147483647, %v1640
    %v1649 = vand.u32 %v1648, 8388607
    %v1650 = vor.u32 %v1649, 8388608
    %v1651 = vsub.s32 0, %v1650
    %v1652 = vadd.s32 %v1647, 1
    %vm1653 = vcmp.gt.s32.totalorder %v1652, 0
    %v1654 = vsel %vm1653, %v1652, 0
    %v1655 = vshrl.u32 %v1654, 5
    %v1656 = vand.u32 %v1654, 31
    %v1657 = vsub.s32 32, %v1656
    %v1658 = vshrl.u32 683565275, %v1657
    %v1659 = vshll.u32 683565275, %v1656
    %v1660 = vshrl.u32 2475754826, %v1657
    %v1661 = vor.u32 %v1659, %v1660
    %v1662 = vshll.u32 2475754826, %v1656
    %v1663 = vshrl.u32 2131351028, %v1657
    %v1664 = vor.u32 %v1662, %v1663
    %v1665 = vshll.u32 2131351028, %v1656
    %v1666 = vshrl.u32 2102212464, %v1657
    %v1667 = vor.u32 %v1665, %v1666
    %v1668 = vshll.u32 2102212464, %v1656
    %v1669 = vshrl.u32 920167782, %v1657
    %v1670 = vor.u32 %v1668, %v1669
    %v1671 = vshll.u32 920167782, %v1656
    %v1672 = vshrl.u32 1326507024, %v1657
    %v1673 = vor.u32 %v1671, %v1672
    %vm1674 = vcmp.lt.s32.totalorder %v1655, 1
    %vm1675 = vcmp.lt.s32.totalorder %v1655, 2
    %vm1676 = vcmp.lt.s32.totalorder %v1655, 3
    %vm1677 = vcmp.lt.s32.totalorder %v1655, 4
    %v1678 = vsel %vm1674, %v1658, %v1661
    %v1679 = vsel %vm1677, %v1667, 2102212464
    %v1680 = vsel %vm1676, %v1664, %v1679
    %v1681 = vsel %vm1675, %v1678, %v1680
    %v1682 = vsel %vm1674, %v1661, %v1664
    %v1683 = vsel %vm1677, %v1670, 920167782
    %v1684 = vsel %vm1676, %v1667, %v1683
    %v1685 = vsel %vm1675, %v1682, %v1684
    %v1686 = vsel %vm1674, %v1664, %v1667
    %v1687 = vsel %vm1677, %v1673, 1326507024
    %v1688 = vsel %vm1676, %v1670, %v1687
    %v1689 = vsel %vm1675, %v1686, %v1688
    %v1690 = vshll.u32 %v1650, 8
    %v1691 = vand.u32 %v1690, 65535
    %v1692 = vshrl.u32 %v1690, 16
    %v1693 = vand.u32 %v1689, 65535
    %v1694 = vshrl.u32 %v1689, 16
    %v1695 = vmul.u32 %v1691, %v1693
    %v1696 = vmul.u32 %v1691, %v1694
    %v1697 = vmul.u32 %v1692, %v1693
    %v1698 = vmul.u32 %v1692, %v1694
    %v1699 = vshll.u32 %v1696, 16
    %v1700 = vshrl.u32 %v1696, 16
    %v1701 = vshll.u32 %v1697, 16
    %v1702 = vshrl.u32 %v1697, 16
    %vm1703 = vc.u32 %v1695, %v1699
    %v1704 = vsel %vm1703, 1, 0
    %v1705 = vadd.s32 %v1695, %v1699
    %v1706 = vadd.s32 %v1698, %v1704
    %vm1707 = vc.u32 %v1705, %v1701
    %v1708 = vsel %vm1707, 1, 0
    %v1709 = vadd.s32 %v1705, %v1701
    %v1710 = vadd.s32 %v1706, %v1708
    %v1711 = vadd.s32 %v1710, %v1700
    %v1712 = vadd.s32 %v1711, %v1702
    %v1713 = vand.u32 %v1690, 65535
    %v1714 = vshrl.u32 %v1690, 16
    %v1715 = vand.u32 %v1685, 65535
    %v1716 = vshrl.u32 %v1685, 16
    %v1717 = vmul.u32 %v1713, %v1715
    %v1718 = vmul.u32 %v1713, %v1716
    %v1719 = vmul.u32 %v1714, %v1715
    %v1720 = vmul.u32 %v1714, %v1716
    %v1721 = vshll.u32 %v1718, 16
    %v1722 = vshrl.u32 %v1718, 16
    %v1723 = vshll.u32 %v1719, 16
    %v1724 = vshrl.u32 %v1719, 16
    %vm1725 = vc.u32 %v1717, %v1721
    %v1726 = vsel %vm1725, 1, 0
    %v1727 = vadd.s32 %v1717, %v1721
    %v1728 = vadd.s32 %v1720, %v1726
    %vm1729 = vc.u32 %v1727, %v1723
    %v1730 = vsel %vm1729, 1, 0
    %v1731 = vadd.s32 %v1727, %v1723
    %v1732 = vadd.s32 %v1728, %v1730
    %v1733 = vadd.s32 %v1732, %v1722
    %v1734 = vadd.s32 %v1733, %v1724
    %v1735 = vmul.u32 %v1690, %v1681
    %v1736 = vadd.s32 %v1712, %v1731
    %vm1737 = vc.u32 %v1712, %v1731
    %v1738 = vadd.s32 %v1734, 1
    %v1739 = vsel %vm1737, %v1738, %v1734
    %v1740 = vadd.s32 %v1735, %v1739
    %v1741 = vadd.s32 %v1740, 536870912
    %v1742 = vshrl.u32 %v1741, 30
    %v1743 = vshll.u32 %v1742, 30
    %v1744 = vsub.s32 %v1740, %v1743
    %vm1745 = vcmp.lt.s32.totalorder %v1744, 0
    %v1746 = vsub.s32 0, %v1744
    %v1747 = vsel %vm1745, %v1746, %v1744
    %v1748 = vclz %v1747
    %v1749 = vsub.s32 %v1748, 2
    %vm1750 = vcmp.gt.s32.totalorder 0, %v1749
    %v1751 = vsel %vm1750, 0, %v1749
    %v1752 = vsub.s32 32, %v1751
    %v1753 = vshll.u32 %v1744, %v1751
    %v1754 = vshrl.u32 %v1736, %v1752
    %v1755 = vor.u32 %v1753, %v1754
    %v1756 = vsub.s32 4294967266, %v1751
    %v1757 = vadd.s32 %v1756, 127
    %v1758 = vshll.u32 %v1757, 23
    %v1759 = vor.u32 4788187, %v1758
    %v1760 = vand.u32 2147483647, %v1759
    %v1762 = vcvt.s32.f32 %v1755
    %v1763 = vmul.f32 %v1762, %v1760
    %v1764 = vxor.u32 %v1763, 2147483648
    %v1765 = vsel %vm1644, %v1764, %v1763
    %v1766 = vsub.s32 4, %v1742
    %v1767 = vsel %vm1644, %v1766, %v1742
    %v1768 = vsel %vm1643, %v1640, %v1765
    %v1769 = vsel %vm1643, 0, %v1767
    %v1770 = vmul.f32 %v1768, %v1768
    %v1771 = vmul.f32 %v1770, -0.001358992
    %v1772 = vadd.f32 %v1771, 0.041655596
    %v1773 = vmul.f32 %v1770, %v1772
    %v1774 = vadd.f32 %v1773, -0.4999988
    %v1775 = vmul.f32 %v1770, %v1774
    %v1776 = vadd.f32 1.0, %v1775
    %v1777 = vmul.f32 %v1768, %v1768
    %v1778 = vmul.f32 %v1777, -0.00019511016
    %v1779 = vadd.f32 %v1778, 0.008332121
    %v1780 = vmul.f32 %v1777, %v1779
    %v1781 = vadd.f32 %v1780, -0.16666654
    %v1782 = vmul.f32 %v1777, %v1781
    %v1783 = vadd.f32 %v1782, 1.0
    %v1784 = vmul.f32 %v1783, %v1768
    %vm1785 = vweird.f32 %v1640
    %v1786 = vadd.s32 %v1769, 3
    %v1787 = vand.u32 %v1786, 3
    %vm1788 = vcmp.lt.s32.totalorder %v1787, 2
    %vm1789 = vcmp.eq.s32.totalorder %v1787, 0
    %v1790 = vxor.u32 %v1784, 2147483648
    %v1791 = vsel %vm1789, %v1776, %v1790
    %vm1792 = vcmp.eq.s32.totalorder %v1787, 2
    %v1793 = vxor.u32 %v1776, 2147483648
    %v1794 = vsel %vm1792, %v1793, %v1784
    %v1795 = vsel %vm1788, %v1791, %v1794
    %v1796 = vsel %vm1785, nan, %v1795
    %v1797 = vand.u32 2147483647, %v1641
    %vm1798 = vcmp.le.f32.partialorder %v1797, 0.7853982
    %vm1799 = vcmp.lt.s32.totalorder %v1641, 0
    %v1800 = vand.u32 %v1641, 2139095040
    %v1801 = vshrl.u32 %v1800, 23
    %v1802 = vsub.s32 %v1801, 127
    %v1803 = vand.u32 2147483647, %v1641
    %v1804 = vand.u32 %v1803, 8388607
    %v1805 = vor.u32 %v1804, 8388608
    %v1806 = vsub.s32 0, %v1805
    %v1807 = vadd.s32 %v1802, 1
    %vm1808 = vcmp.gt.s32.totalorder %v1807, 0
    %v1809 = vsel %vm1808, %v1807, 0
    %v1810 = vshrl.u32 %v1809, 5
    %v1811 = vand.u32 %v1809, 31
    %v1812 = vsub.s32 32, %v1811
    %v1813 = vshrl.u32 683565275, %v1812
    %v1814 = vshll.u32 683565275, %v1811
    %v1815 = vshrl.u32 2475754826, %v1812
    %v1816 = vor.u32 %v1814, %v1815
    %v1817 = vshll.u32 2475754826, %v1811
    %v1818 = vshrl.u32 2131351028, %v1812
    %v1819 = vor.u32 %v1817, %v1818
    %v1820 = vshll.u32 2131351028, %v1811
    %v1821 = vshrl.u32 2102212464, %v1812
    %v1822 = vor.u32 %v1820, %v1821
    %v1823 = vshll.u32 2102212464, %v1811
    %v1824 = vshrl.u32 920167782, %v1812
    %v1825 = vor.u32 %v1823, %v1824
    %v1826 = vshll.u32 920167782, %v1811
    %v1827 = vshrl.u32 1326507024, %v1812
    %v1828 = vor.u32 %v1826, %v1827
    %vm1829 = vcmp.lt.s32.totalorder %v1810, 1
    %vm1830 = vcmp.lt.s32.totalorder %v1810, 2
    %vm1831 = vcmp.lt.s32.totalorder %v1810, 3
    %vm1832 = vcmp.lt.s32.totalorder %v1810, 4
    %v1833 = vsel %vm1829, %v1813, %v1816
    %v1834 = vsel %vm1832, %v1822, 2102212464
    %v1835 = vsel %vm1831, %v1819, %v1834
    %v1836 = vsel %vm1830, %v1833, %v1835
    %v1837 = vsel %vm1829, %v1816, %v1819
    %v1838 = vsel %vm1832, %v1825, 920167782
    %v1839 = vsel %vm1831, %v1822, %v1838
    %v1840 = vsel %vm1830, %v1837, %v1839
    %v1841 = vsel %vm1829, %v1819, %v1822
    %v1842 = vsel %vm1832, %v1828, 1326507024
    %v1843 = vsel %vm1831, %v1825, %v1842
    %v1844 = vsel %vm1830, %v1841, %v1843
    %v1845 = vshll.u32 %v1805, 8
    %v1846 = vand.u32 %v1845, 65535
    %v1847 = vshrl.u32 %v1845, 16
    %v1848 = vand.u32 %v1844, 65535
    %v1849 = vshrl.u32 %v1844, 16
    %v1850 = vmul.u32 %v1846, %v1848
    %v1851 = vmul.u32 %v1846, %v1849
    %v1852 = vmul.u32 %v1847, %v1848
    %v1853 = vmul.u32 %v1847, %v1849
    %v1854 = vshll.u32 %v1851, 16
    %v1855 = vshrl.u32 %v1851, 16
    %v1856 = vshll.u32 %v1852, 16
    %v1857 = vshrl.u32 %v1852, 16
    %vm1858 = vc.u32 %v1850, %v1854
    %v1859 = vsel %vm1858, 1, 0
    %v1860 = vadd.s32 %v1850, %v1854
    %v1861 = vadd.s32 %v1853, %v1859
    %vm1862 = vc.u32 %v1860, %v1856
    %v1863 = vsel %vm1862, 1, 0
    %v1864 = vadd.s32 %v1860, %v1856
    %v1865 = vadd.s32 %v1861, %v1863
    %v1866 = vadd.s32 %v1865, %v1855
    %v1867 = vadd.s32 %v1866, %v1857
    %v1868 = vand.u32 %v1845, 65535
    %v1869 = vshrl.u32 %v1845, 16
    %v1870 = vand.u32 %v1840, 65535
    %v1871 = vshrl.u32 %v1840, 16
    %v1872 = vmul.u32 %v1868, %v1870
    %v1873 = vmul.u32 %v1868, %v1871
    %v1874 = vmul.u32 %v1869, %v1870
    %v1875 = vmul.u32 %v1869, %v1871
    %v1876 = vshll.u32 %v1873, 16
    %v1877 = vshrl.u32 %v1873, 16
    %v1878 = vshll.u32 %v1874, 16
    %v1879 = vshrl.u32 %v1874, 16
    %vm1880 = vc.u32 %v1872, %v1876
    %v1881 = vsel %vm1880, 1, 0
    %v1882 = vadd.s32 %v1872, %v1876
    %v1883 = vadd.s32 %v1875, %v1881
    %vm1884 = vc.u32 %v1882, %v1878
    %v1885 = vsel %vm1884, 1, 0
    %v1886 = vadd.s32 %v1882, %v1878
    %v1887 = vadd.s32 %v1883, %v1885
    %v1888 = vadd.s32 %v1887, %v1877
    %v1889 = vadd.s32 %v1888, %v1879
    %v1890 = vmul.u32 %v1845, %v1836
    %v1891 = vadd.s32 %v1867, %v1886
    %vm1892 = vc.u32 %v1867, %v1886
    %v1893 = vadd.s32 %v1889, 1
    %v1894 = vsel %vm1892, %v1893, %v1889
    %v1895 = vadd.s32 %v1890, %v1894
    %v1896 = vadd.s32 %v1895, 536870912
    %v1897 = vshrl.u32 %v1896, 30
    %v1898 = vshll.u32 %v1897, 30
    %v1899 = vsub.s32 %v1895, %v1898
    %vm1900 = vcmp.lt.s32.totalorder %v1899, 0
    %v1901 = vsub.s32 0, %v1899
    %v1902 = vsel %vm1900, %v1901, %v1899
    %v1903 = vclz %v1902
    %v1904 = vsub.s32 %v1903, 2
    %vm1905 = vcmp.gt.s32.totalorder 0, %v1904
    %v1906 = vsel %vm1905, 0, %v1904
    %v1907 = vsub.s32 32, %v1906
    %v1908 = vshll.u32 %v1899, %v1906
    %v1909 = vshrl.u32 %v1891, %v1907
    %v1910 = vor.u32 %v1908, %v1909
    %v1911 = vsub.s32 4294967266, %v1906
    %v1912 = vadd.s32 %v1911, 127
    %v1913 = vshll.u32 %v1912, 23
    %v1914 = vor.u32 4788187, %v1913
    %v1915 = vand.u32 2147483647, %v1914
    %v1917 = vcvt.s32.f32 %v1910
    %v1918 = vmul.f32 %v1917, %v1915
    %v1919 = vxor.u32 %v1918, 2147483648
    %v1920 = vsel %vm1799, %v1919, %v1918
    %v1921 = vsub.s32 4, %v1897
    %v1922 = vsel %vm1799, %v1921, %v1897
    %v1923 = vsel %vm1798, %v1641, %v1920
    %v1924 = vsel %vm1798, 0, %v1922
    %v1925 = vmul.f32 %v1923, %v1923
    %v1926 = vmul.f32 %v1925, -0.001358992
    %v1927 = vadd.f32 %v1926, 0.041655596
    %v1928 = vmul.f32 %v1925, %v1927
    %v1929 = vadd.f32 %v1928, -0.4999988
    %v1930 = vmul.f32 %v1925, %v1929
    %v1931 = vadd.f32 1.0, %v1930
    %v1932 = vmul.f32 %v1923, %v1923
    %v1933 = vmul.f32 %v1932, -0.00019511016
    %v1934 = vadd.f32 %v1933, 0.008332121
    %v1935 = vmul.f32 %v1932, %v1934
    %v1936 = vadd.f32 %v1935, -0.16666654
    %v1937 = vmul.f32 %v1932, %v1936
    %v1938 = vadd.f32 %v1937, 1.0
    %v1939 = vmul.f32 %v1938, %v1923
    %vm1940 = vweird.f32 %v1641
    %v1941 = vadd.s32 %v1924, 3
    %v1942 = vand.u32 %v1941, 3
    %vm1943 = vcmp.lt.s32.totalorder %v1942, 2
    %vm1944 = vcmp.eq.s32.totalorder %v1942, 0
    %v1945 = vxor.u32 %v1939, 2147483648
    %v1946 = vsel %vm1944, %v1931, %v1945
    %vm1947 = vcmp.eq.s32.totalorder %v1942, 2
    %v1948 = vxor.u32 %v1931, 2147483648
    %v1949 = vsel %vm1947, %v1948, %v1939
    %v1950 = vsel %vm1943, %v1946, %v1949
    %v1951 = vsel %vm1940, nan, %v1950
    %v1952 = vstv %s1637
    %v1953 = vmul.f32 %v1952, %v1796
    %v1954 = vmul.f32 %v1952, %v1951
    %v1955 = vadd.f32 %v1635, %v1953
    %v1956 = vadd.f32 %v1636, %v1954
    %s1957 = sld [smem:[#allocation2 + $0xc]]
    %s1958 = sld [smem:[#allocation2 + $0x6]]
    %v1959 = vstv %s1958
    %v1960 = vmul.f32 %v1959, %v41
    %v1961 = vmul.f32 %v1959, %v42
    %v1962 = vand.u32 2147483647, %v1960
    %vm1963 = vcmp.le.f32.partialorder %v1962, 0.7853982
    %vm1964 = vcmp.lt.s32.totalorder %v1960, 0
    %v1965 = vand.u32 %v1960, 2139095040
    %v1966 = vshrl.u32 %v1965, 23
    %v1967 = vsub.s32 %v1966, 127
    %v1968 = vand.u32 2147483647, %v1960
    %v1969 = vand.u32 %v1968, 8388607
    %v1970 = vor.u32 %v1969, 8388608
    %v1971 = vsub.s32 0, %v1970
    %v1972 = vadd.s32 %v1967, 1
    %vm1973 = vcmp.gt.s32.totalorder %v1972, 0
    %v1974 = vsel %vm1973, %v1972, 0
    %v1975 = vshrl.u32 %v1974, 5
    %v1976 = vand.u32 %v1974, 31
    %v1977 = vsub.s32 32, %v1976
    %v1978 = vshrl.u32 683565275, %v1977
    %v1979 = vshll.u32 683565275, %v1976
    %v1980 = vshrl.u32 2475754826, %v1977
    %v1981 = vor.u32 %v1979, %v1980
    %v1982 = vshll.u32 2475754826, %v1976
    %v1983 = vshrl.u32 2131351028, %v1977
    %v1984 = vor.u32 %v1982, %v1983
    %v1985 = vshll.u32 2131351028, %v1976
    %v1986 = vshrl.u32 2102212464, %v1977
    %v1987 = vor.u32 %v1985, %v1986
    %v1988 = vshll.u32 2102212464, %v1976
    %v1989 = vshrl.u32 920167782, %v1977
    %v1990 = vor.u32 %v1988, %v1989
    %v1991 = vshll.u32 920167782, %v1976
    %v1992 = vshrl.u32 1326507024, %v1977
    %v1993 = vor.u32 %v1991, %v1992
    %vm1994 = vcmp.lt.s32.totalorder %v1975, 1
    %vm1995 = vcmp.lt.s32.totalorder %v1975, 2
    %vm1996 = vcmp.lt.s32.totalorder %v1975, 3
    %vm1997 = vcmp.lt.s32.totalorder %v1975, 4
    %v1998 = vsel %vm1994, %v1978, %v1981
    %v1999 = vsel %vm1997, %v1987, 2102212464
    %v2000 = vsel %vm1996, %v1984, %v1999
    %v2001 = vsel %vm1995, %v1998, %v2000
    %v2002 = vsel %vm1994, %v1981, %v1984
    %v2003 = vsel %vm1997, %v1990, 920167782
    %v2004 = vsel %vm1996, %v1987, %v2003
    %v2005 = vsel %vm1995, %v2002, %v2004
    %v2006 = vsel %vm1994, %v1984, %v1987
    %v2007 = vsel %vm1997, %v1993, 1326507024
    %v2008 = vsel %vm1996, %v1990, %v2007
    %v2009 = vsel %vm1995, %v2006, %v2008
    %v2010 = vshll.u32 %v1970, 8
    %v2011 = vand.u32 %v2010, 65535
    %v2012 = vshrl.u32 %v2010, 16
    %v2013 = vand.u32 %v2009, 65535
    %v2014 = vshrl.u32 %v2009, 16
    %v2015 = vmul.u32 %v2011, %v2013
    %v2016 = vmul.u32 %v2011, %v2014
    %v2017 = vmul.u32 %v2012, %v2013
    %v2018 = vmul.u32 %v2012, %v2014
    %v2019 = vshll.u32 %v2016, 16
    %v2020 = vshrl.u32 %v2016, 16
    %v2021 = vshll.u32 %v2017, 16
    %v2022 = vshrl.u32 %v2017, 16
    %vm2023 = vc.u32 %v2015, %v2019
    %v2024 = vsel %vm2023, 1, 0
    %v2025 = vadd.s32 %v2015, %v2019
    %v2026 = vadd.s32 %v2018, %v2024
    %vm2027 = vc.u32 %v2025, %v2021
    %v2028 = vsel %vm2027, 1, 0
    %v2029 = vadd.s32 %v2025, %v2021
    %v2030 = vadd.s32 %v2026, %v2028
    %v2031 = vadd.s32 %v2030, %v2020
    %v2032 = vadd.s32 %v2031, %v2022
    %v2033 = vand.u32 %v2010, 65535
    %v2034 = vshrl.u32 %v2010, 16
    %v2035 = vand.u32 %v2005, 65535
    %v2036 = vshrl.u32 %v2005, 16
    %v2037 = vmul.u32 %v2033, %v2035
    %v2038 = vmul.u32 %v2033, %v2036
    %v2039 = vmul.u32 %v2034, %v2035
    %v2040 = vmul.u32 %v2034, %v2036
    %v2041 = vshll.u32 %v2038, 16
    %v2042 = vshrl.u32 %v2038, 16
    %v2043 = vshll.u32 %v2039, 16
    %v2044 = vshrl.u32 %v2039, 16
    %vm2045 = vc.u32 %v2037, %v2041
    %v2046 = vsel %vm2045, 1, 0
    %v2047 = vadd.s32 %v2037, %v2041
    %v2048 = vadd.s32 %v2040, %v2046
    %vm2049 = vc.u32 %v2047, %v2043
    %v2050 = vsel %vm2049, 1, 0
    %v2051 = vadd.s32 %v2047, %v2043
    %v2052 = vadd.s32 %v2048, %v2050
    %v2053 = vadd.s32 %v2052, %v2042
    %v2054 = vadd.s32 %v2053, %v2044
    %v2055 = vmul.u32 %v2010, %v2001
    %v2056 = vadd.s32 %v2032, %v2051
    %vm2057 = vc.u32 %v2032, %v2051
    %v2058 = vadd.s32 %v2054, 1
    %v2059 = vsel %vm2057, %v2058, %v2054
    %v2060 = vadd.s32 %v2055, %v2059
    %v2061 = vadd.s32 %v2060, 536870912
    %v2062 = vshrl.u32 %v2061, 30
    %v2063 = vshll.u32 %v2062, 30
    %v2064 = vsub.s32 %v2060, %v2063
    %vm2065 = vcmp.lt.s32.totalorder %v2064, 0
    %v2066 = vsub.s32 0, %v2064
    %v2067 = vsel %vm2065, %v2066, %v2064
    %v2068 = vclz %v2067
    %v2069 = vsub.s32 %v2068, 2
    %vm2070 = vcmp.gt.s32.totalorder 0, %v2069
    %v2071 = vsel %vm2070, 0, %v2069
    %v2072 = vsub.s32 32, %v2071
    %v2073 = vshll.u32 %v2064, %v2071
    %v2074 = vshrl.u32 %v2056, %v2072
    %v2075 = vor.u32 %v2073, %v2074
    %v2076 = vsub.s32 4294967266, %v2071
    %v2077 = vadd.s32 %v2076, 127
    %v2078 = vshll.u32 %v2077, 23
    %v2079 = vor.u32 4788187, %v2078
    %v2080 = vand.u32 2147483647, %v2079
    %v2082 = vcvt.s32.f32 %v2075
    %v2083 = vmul.f32 %v2082, %v2080
    %v2084 = vxor.u32 %v2083, 2147483648
    %v2085 = vsel %vm1964, %v2084, %v2083
    %v2086 = vsub.s32 4, %v2062
    %v2087 = vsel %vm1964, %v2086, %v2062
    %v2088 = vsel %vm1963, %v1960, %v2085
    %v2089 = vsel %vm1963, 0, %v2087
    %v2090 = vmul.f32 %v2088, %v2088
    %v2091 = vmul.f32 %v2090, -0.001358992
    %v2092 = vadd.f32 %v2091, 0.041655596
    %v2093 = vmul.f32 %v2090, %v2092
    %v2094 = vadd.f32 %v2093, -0.4999988
    %v2095 = vmul.f32 %v2090, %v2094
    %v2096 = vadd.f32 1.0, %v2095
    %v2097 = vmul.f32 %v2088, %v2088
    %v2098 = vmul.f32 %v2097, -0.00019511016
    %v2099 = vadd.f32 %v2098, 0.008332121
    %v2100 = vmul.f32 %v2097, %v2099
    %v2101 = vadd.f32 %v2100, -0.16666654
    %v2102 = vmul.f32 %v2097, %v2101
    %v2103 = vadd.f32 %v2102, 1.0
    %v2104 = vmul.f32 %v2103, %v2088
    %vm2105 = vweird.f32 %v1960
    %v2106 = vadd.s32 %v2089, 3
    %v2107 = vand.u32 %v2106, 3
    %vm2108 = vcmp.lt.s32.totalorder %v2107, 2
    %vm2109 = vcmp.eq.s32.totalorder %v2107, 0
    %v2110 = vxor.u32 %v2104, 2147483648
    %v2111 = vsel %vm2109, %v2096, %v2110
    %vm2112 = vcmp.eq.s32.totalorder %v2107, 2
    %v2113 = vxor.u32 %v2096, 2147483648
    %v2114 = vsel %vm2112, %v2113, %v2104
    %v2115 = vsel %vm2108, %v2111, %v2114
    %v2116 = vsel %vm2105, nan, %v2115
    %v2117 = vand.u32 2147483647, %v1961
    %vm2118 = vcmp.le.f32.partialorder %v2117, 0.7853982
    %vm2119 = vcmp.lt.s32.totalorder %v1961, 0
    %v2120 = vand.u32 %v1961, 2139095040
    %v2121 = vshrl.u32 %v2120, 23
    %v2122 = vsub.s32 %v2121, 127
    %v2123 = vand.u32 2147483647, %v1961
    %v2124 = vand.u32 %v2123, 8388607
    %v2125 = vor.u32 %v2124, 8388608
    %v2126 = vsub.s32 0, %v2125
    %v2127 = vadd.s32 %v2122, 1
    %vm2128 = vcmp.gt.s32.totalorder %v2127, 0
    %v2129 = vsel %vm2128, %v2127, 0
    %v2130 = vshrl.u32 %v2129, 5
    %v2131 = vand.u32 %v2129, 31
    %v2132 = vsub.s32 32, %v2131
    %v2133 = vshrl.u32 683565275, %v2132
    %v2134 = vshll.u32 683565275, %v2131
    %v2135 = vshrl.u32 2475754826, %v2132
    %v2136 = vor.u32 %v2134, %v2135
    %v2137 = vshll.u32 2475754826, %v2131
    %v2138 = vshrl.u32 2131351028, %v2132
    %v2139 = vor.u32 %v2137, %v2138
    %v2140 = vshll.u32 2131351028, %v2131
    %v2141 = vshrl.u32 2102212464, %v2132
    %v2142 = vor.u32 %v2140, %v2141
    %v2143 = vshll.u32 2102212464, %v2131
    %v2144 = vshrl.u32 920167782, %v2132
    %v2145 = vor.u32 %v2143, %v2144
    %v2146 = vshll.u32 920167782, %v2131
    %v2147 = vshrl.u32 1326507024, %v2132
    %v2148 = vor.u32 %v2146, %v2147
    %vm2149 = vcmp.lt.s32.totalorder %v2130, 1
    %vm2150 = vcmp.lt.s32.totalorder %v2130, 2
    %vm2151 = vcmp.lt.s32.totalorder %v2130, 3
    %vm2152 = vcmp.lt.s32.totalorder %v2130, 4
    %v2153 = vsel %vm2149, %v2133, %v2136
    %v2154 = vsel %vm2152, %v2142, 2102212464
    %v2155 = vsel %vm2151, %v2139, %v2154
    %v2156 = vsel %vm2150, %v2153, %v2155
    %v2157 = vsel %vm2149, %v2136, %v2139
    %v2158 = vsel %vm2152, %v2145, 920167782
    %v2159 = vsel %vm2151, %v2142, %v2158
    %v2160 = vsel %vm2150, %v2157, %v2159
    %v2161 = vsel %vm2149, %v2139, %v2142
    %v2162 = vsel %vm2152, %v2148, 1326507024
    %v2163 = vsel %vm2151, %v2145, %v2162
    %v2164 = vsel %vm2150, %v2161, %v2163
    %v2165 = vshll.u32 %v2125, 8
    %v2166 = vand.u32 %v2165, 65535
    %v2167 = vshrl.u32 %v2165, 16
    %v2168 = vand.u32 %v2164, 65535
    %v2169 = vshrl.u32 %v2164, 16
    %v2170 = vmul.u32 %v2166, %v2168
    %v2171 = vmul.u32 %v2166, %v2169
    %v2172 = vmul.u32 %v2167, %v2168
    %v2173 = vmul.u32 %v2167, %v2169
    %v2174 = vshll.u32 %v2171, 16
    %v2175 = vshrl.u32 %v2171, 16
    %v2176 = vshll.u32 %v2172, 16
    %v2177 = vshrl.u32 %v2172, 16
    %vm2178 = vc.u32 %v2170, %v2174
    %v2179 = vsel %vm2178, 1, 0
    %v2180 = vadd.s32 %v2170, %v2174
    %v2181 = vadd.s32 %v2173, %v2179
    %vm2182 = vc.u32 %v2180, %v2176
    %v2183 = vsel %vm2182, 1, 0
    %v2184 = vadd.s32 %v2180, %v2176
    %v2185 = vadd.s32 %v2181, %v2183
    %v2186 = vadd.s32 %v2185, %v2175
    %v2187 = vadd.s32 %v2186, %v2177
    %v2188 = vand.u32 %v2165, 65535
    %v2189 = vshrl.u32 %v2165, 16
    %v2190 = vand.u32 %v2160, 65535
    %v2191 = vshrl.u32 %v2160, 16
    %v2192 = vmul.u32 %v2188, %v2190
    %v2193 = vmul.u32 %v2188, %v2191
    %v2194 = vmul.u32 %v2189, %v2190
    %v2195 = vmul.u32 %v2189, %v2191
    %v2196 = vshll.u32 %v2193, 16
    %v2197 = vshrl.u32 %v2193, 16
    %v2198 = vshll.u32 %v2194, 16
    %v2199 = vshrl.u32 %v2194, 16
    %vm2200 = vc.u32 %v2192, %v2196
    %v2201 = vsel %vm2200, 1, 0
    %v2202 = vadd.s32 %v2192, %v2196
    %v2203 = vadd.s32 %v2195, %v2201
    %vm2204 = vc.u32 %v2202, %v2198
    %v2205 = vsel %vm2204, 1, 0
    %v2206 = vadd.s32 %v2202, %v2198
    %v2207 = vadd.s32 %v2203, %v2205
    %v2208 = vadd.s32 %v2207, %v2197
    %v2209 = vadd.s32 %v2208, %v2199
    %v2210 = vmul.u32 %v2165, %v2156
    %v2211 = vadd.s32 %v2187, %v2206
    %vm2212 = vc.u32 %v2187, %v2206
    %v2213 = vadd.s32 %v2209, 1
    %v2214 = vsel %vm2212, %v2213, %v2209
    %v2215 = vadd.s32 %v2210, %v2214
    %v2216 = vadd.s32 %v2215, 536870912
    %v2217 = vshrl.u32 %v2216, 30
    %v2218 = vshll.u32 %v2217, 30
    %v2219 = vsub.s32 %v2215, %v2218
    %vm2220 = vcmp.lt.s32.totalorder %v2219, 0
    %v2221 = vsub.s32 0, %v2219
    %v2222 = vsel %vm2220, %v2221, %v2219
    %v2223 = vclz %v2222
    %v2224 = vsub.s32 %v2223, 2
    %vm2225 = vcmp.gt.s32.totalorder 0, %v2224
    %v2226 = vsel %vm2225, 0, %v2224
    %v2227 = vsub.s32 32, %v2226
    %v2228 = vshll.u32 %v2219, %v2226
    %v2229 = vshrl.u32 %v2211, %v2227
    %v2230 = vor.u32 %v2228, %v2229
    %v2231 = vsub.s32 4294967266, %v2226
    %v2232 = vadd.s32 %v2231, 127
    %v2233 = vshll.u32 %v2232, 23
    %v2234 = vor.u32 4788187, %v2233
    %v2235 = vand.u32 2147483647, %v2234
    %v2237 = vcvt.s32.f32 %v2230
    %v2238 = vmul.f32 %v2237, %v2235
    %v2239 = vxor.u32 %v2238, 2147483648
    %v2240 = vsel %vm2119, %v2239, %v2238
    %v2241 = vsub.s32 4, %v2217
    %v2242 = vsel %vm2119, %v2241, %v2217
    %v2243 = vsel %vm2118, %v1961, %v2240
    %v2244 = vsel %vm2118, 0, %v2242
    %v2245 = vmul.f32 %v2243, %v2243
    %v2246 = vmul.f32 %v2245, -0.001358992
    %v2247 = vadd.f32 %v2246, 0.041655596
    %v2248 = vmul.f32 %v2245, %v2247
    %v2249 = vadd.f32 %v2248, -0.4999988
    %v2250 = vmul.f32 %v2245, %v2249
    %v2251 = vadd.f32 1.0, %v2250
    %v2252 = vmul.f32 %v2243, %v2243
    %v2253 = vmul.f32 %v2252, -0.00019511016
    %v2254 = vadd.f32 %v2253, 0.008332121
    %v2255 = vmul.f32 %v2252, %v2254
    %v2256 = vadd.f32 %v2255, -0.16666654
    %v2257 = vmul.f32 %v2252, %v2256
    %v2258 = vadd.f32 %v2257, 1.0
    %v2259 = vmul.f32 %v2258, %v2243
    %vm2260 = vweird.f32 %v1961
    %v2261 = vadd.s32 %v2244, 3
    %v2262 = vand.u32 %v2261, 3
    %vm2263 = vcmp.lt.s32.totalorder %v2262, 2
    %vm2264 = vcmp.eq.s32.totalorder %v2262, 0
    %v2265 = vxor.u32 %v2259, 2147483648
    %v2266 = vsel %vm2264, %v2251, %v2265
    %vm2267 = vcmp.eq.s32.totalorder %v2262, 2
    %v2268 = vxor.u32 %v2251, 2147483648
    %v2269 = vsel %vm2267, %v2268, %v2259
    %v2270 = vsel %vm2263, %v2266, %v2269
    %v2271 = vsel %vm2260, nan, %v2270
    %v2272 = vstv %s1957
    %v2273 = vmul.f32 %v2272, %v2116
    %v2274 = vmul.f32 %v2272, %v2271
    %v2275 = vadd.f32 %v1955, %v2273
    %v2276 = vadd.f32 %v1956, %v2274
    %2277 = vst [vmem:[#allocation7] sm:$0xff] %v2275
    %2278 = vst [vmem:[#allocation7 + $0x8] sm:$0xff] %v2276
    // Predicated region
    $region18: #{tpu_custom_call.1} parent=1 // pred_check
      _
    $region19: #{tpu_custom_call.1} parent=1 // pred_check_branch
      %2280 = sbr.rel (0) target = $region21
    $region20: #{tpu_custom_call.1} parent=1 // pred_region
      %2282 = vsyncadd [#allocation4], 0
      %s2283 = sshll.u32 [#allocation7], 4
      %s2284 = int_to_ptr.vmem [resolvable:$true] %s2283
      %s2285 = sshll.u32 %s2, 4
      %s2286 = int_to_ptr.hbm [resolvable:$true] %s2285
      %2291 = dma.vmem_to_hbm [thread:$0]  %s2284, 256, %s2286, [#allocation4], 128, 128, 8
    $region21: #{tpu_custom_call.1} parent=1 // pred_fallthru
      _
    // Predicated region
    $region22: #{tpu_custom_call.1} parent=1 // pred_check
      _
    $region23: #{tpu_custom_call.1} parent=1 // pred_check_branch
      %2293 = sbr.rel (0) target = $region25
    $region24: #{tpu_custom_call.1} parent=1 // pred_region
      %2295 = dma.done [#allocation4], 256
    $region25: #{tpu_custom_call.1} parent=1 // pred_fallthru
      _
    %2296 = vsyncpa [#allocation3], 1
    %2297 = vsyncpa [#allocation4], 1
    %2298 = vsyncpa [#allocation5], 1

</llo_original>
